<compile_context>
chip_gen: v5e
topology: v5e:2x2
jax: 0.10.0
libtpu: 0.0.40
codegen_flags: <defaults>
</compile_context>

<pallas_src>
import functools
import math

import jax
import jax.numpy as jnp
from jax import lax
from jax.experimental import pallas as pl
from jax.experimental.pallas import tpu as pltpu


def _layernorm(v, g, b, eps=1e-5):
    mu = jnp.mean(v, axis=-1, keepdims=True)
    var = jnp.mean((v - mu) ** 2, axis=-1, keepdims=True)
    return (v - mu) * lax.rsqrt(var + eps) * g + b


def _heads_first(x3):
    """(rows, heads, hs) -> (heads, rows, hs); lane dim stays last."""
    if hasattr(pltpu, "einshape"):
        return pltpu.einshape("rhd->hrd", x3)
    return jnp.transpose(x3, (1, 0, 2))


def _heads_last(x3):
    """(heads, rows, hs) -> (rows, heads, hs); lane dim stays last."""
    if hasattr(pltpu, "einshape"):
        return pltpu.einshape("hrd->rhd", x3)
    return jnp.transpose(x3, (1, 0, 2))


# ----------------------- phase 1: K/V projection (once per batch) ----------------

def kv_project_kernel(x_ref, g1_ref, be1_ref, wkv_ref, bkv_ref, k_ref, v_ref,
                      *, n_heads: int):
    """ln1(x) @ [Wk|Wv] + b for the whole sequence; bf16, heads-first layout."""
    f32, bf16 = jnp.float32, jnp.bfloat16
    x = x_ref[...]                                   # (T, E) f32, full sequence
    T, E = x.shape
    hs = E // n_heads

    ln1 = _layernorm(x, g1_ref[...], be1_ref[...])
    kv = jnp.dot(ln1.astype(bf16), wkv_ref[...],
                 preferred_element_type=f32) + bkv_ref[...]        # (T, 2E) f32
    kv = kv.astype(bf16)                   # cast BEFORE the head relayout
    # NOTE: output stores are hs-wide in the lane dim; lane-dense when hs >= 128.
    k_ref[...] = _heads_first(kv[:, :E].reshape(T, n_heads, hs))   # (H, T, hs)
    v_ref[...] = _heads_first(kv[:, E:].reshape(T, n_heads, hs))   # (H, T, hs)


# --------------- phase 2: Q + causal flash attention + FFN per query tile --------

def block_kernel(x_ref, k_ref, v_ref,
                 g1_ref, be1_ref, g2_ref, be2_ref,
                 wq_ref, bq_ref, wo_ref, bo_ref,
                 w1_ref, b1_ref, w2_ref, b2_ref,
                 o_ref, m_sc, l_sc, acc_sc, *, n_heads: int):
    f32, bf16 = jnp.float32, jnp.bfloat16
    x_tile = x_ref[...]                              # (TQ, E) f32 — query tile only
    TQ, E = x_tile.shape
    H = n_heads
    hs = E // H
    TK = TQ                                          # KV tile == query tile
    qi = pl.program_id(1)
    q_start = qi * TQ
    scale = 1.0 / math.sqrt(hs)

    # ---- LayerNorm1 (query rows only) + Q projection --------------------------
    ln1 = _layernorm(x_tile, g1_ref[...], be1_ref[...])
    q = jnp.dot(ln1.astype(bf16), wq_ref[...],
                preferred_element_type=f32) + bq_ref[...]           # (TQ, E) f32
    qh = _heads_first((q * scale).reshape(TQ, H, hs)).astype(bf16)  # (H, TQ, hs)

    # ---- causal flash attention: online softmax over KV tiles 0..qi ------------
    m_sc[...] = jnp.full_like(m_sc, -1e30)
    l_sc[...] = jnp.zeros_like(l_sc)
    acc_sc[...] = jnp.zeros_like(acc_sc)
    # 2-D row index, hoisted out of the KV loop and broadcast over heads.
    row = lax.broadcasted_iota(jnp.int32, (TQ, TK), 0) + q_start

    @pl.loop(0, qi + 1)                              # skip fully-masked KV tiles
    def _(j):
        start = pl.multiple_of(j * TK, TK)
        k_j = k_ref[:, pl.ds(start, TK), :]          # (H, TK, hs) bf16
        v_j = v_ref[:, pl.ds(start, TK), :]          # (H, TK, hs) bf16
        s = jnp.einsum("hqd,hkd->hqk", qh, k_j,
                       preferred_element_type=f32)   # (H, TQ, TK) f32
        col = lax.broadcasted_iota(jnp.int32, (TQ, TK), 1) + start
        # -1e30 is safe only because scores stay f32 (bf16 would overflow to -inf).
        s = jnp.where((col <= row)[None], s, -1e30)
        m_prev = m_sc[...]
        m_new = jnp.maximum(m_prev, jnp.max(s, axis=-1, keepdims=True))
        alpha = jnp.exp(m_prev - m_new)
        p = jnp.exp(s - m_new)                       # f32 exp (EUP)
        l_sc[...] = alpha * l_sc[...] + jnp.sum(p, axis=-1, keepdims=True)
        acc_sc[...] = alpha * acc_sc[...] + jnp.einsum(
            "hqk,hkd->hqd", p.astype(bf16), v_j, preferred_element_type=f32)
        m_sc[...] = m_new

    # Fold 1/l once per row (EUP reciprocal; ~1e-3 rel err, inside test tolerance).
    pv = acc_sc[...] * pl.reciprocal(l_sc[...], approx=True)        # (H, TQ, hs)
    att = _heads_last(pv).reshape(TQ, E)
    att = jnp.dot(att.astype(bf16), wo_ref[...],
                  preferred_element_type=f32) + bo_ref[...]

    x1 = x_tile + att                    # residual 1 (attention dropout = identity)

    # ---- LayerNorm2 + feed-forward ---------------------------------------------
    ln2 = _layernorm(x1, g2_ref[...], be2_ref[...])
    h = jnp.dot(ln2.astype(bf16), w1_ref[...],
                preferred_element_type=f32) + b1_ref[...]
    h = jnp.maximum(h, 0.0)              # ReLU
    ff = jnp.dot(h.astype(bf16), w2_ref[...],
                 preferred_element_type=f32) + b2_ref[...]

    o_ref[...] = x1 + ff                 # residual 2 (ffn dropout = identity)


# ------------------------------------ wrapper ------------------------------------

def _vmem_budget_bytes():
    """~75% of per-TensorCore VMEM: ~96 MiB on v5e/v6e (128 MiB), ~48 MiB on v7x."""
    cap = 128 * 1024 * 1024
    try:
        cap = int(pltpu.get_tpu_info().vmem_capacity_bytes)
    except Exception:
        pass
    return min(100 * 1024 * 1024, (cap * 3) // 4)


def _const_spec(shape, *, grid_rank, single_buffer):
    """BlockSpec for arrays whose block index never changes (weights / biases)."""
    if grid_rank == 1:
        imap = lambda b: (0,) * len(shape)
    else:
        imap = lambda b, qi: (0,) * len(shape)
    if single_buffer and hasattr(pl, "Buffered"):
        # Constant block index -> a second pipeline buffer is pure VMEM waste.
        return pl.BlockSpec(shape, imap, pipeline_mode=pl.Buffered(1))
    return pl.BlockSpec(shape, imap)


def _forward(x, params, *, n_heads, q_tile, single_buffer_weights):
    (g1, be1, g2, be2, wq, bq, wkv, bkv, wo, bo, w1, b1, w2, b2) = params
    B, T, E = x.shape
    H = n_heads
    assert E % H == 0
    hs = E // H
    H4 = 4 * E
    TQ = min(q_tile, T)
    assert T % TQ == 0, "sequence length must be divisible by the query tile"
    nq = T // TQ
    vmem_limit = _vmem_budget_bytes()

    # ---------- phase 1: LN1 + fused K|V projection, once per batch element -----
    c1 = functools.partial(_const_spec, grid_rank=1,
                           single_buffer=single_buffer_weights)
    k_heads, v_heads = pl.pallas_call(
        functools.partial(kv_project_kernel, n_heads=H),
        out_shape=(jax.ShapeDtypeStruct((B, H, T, hs), jnp.bfloat16),
                   jax.ShapeDtypeStruct((B, H, T, hs), jnp.bfloat16)),
        grid_spec=pltpu.PrefetchScalarGridSpec(
            num_scalar_prefetch=0,
            grid=(B,),
            in_specs=[
                pl.BlockSpec((None, T, E), lambda b: (b, 0, 0)),   # x (full seq)
                c1((1, E)), c1((1, E)),                            # ln1 gamma/beta
                c1((E, 2 * E)), c1((1, 2 * E)),                    # wkv, bkv
            ],
            out_specs=(
                pl.BlockSpec((None, H, T, hs), lambda b: (b, 0, 0, 0)),
                pl.BlockSpec((None, H, T, hs), lambda b: (b, 0, 0, 0)),
            ),
        ),
        compiler_params=pltpu.CompilerParams(
            dimension_semantics=("parallel",),
            vmem_limit_bytes=vmem_limit,
        ),
        cost_estimate=pl.CostEstimate(
            flops=int(2 * B * T * (2 * E) * E),
            transcendentals=0,
            bytes_accessed=int(x.size * 4 + wkv.size * 2 + bkv.size * 4
                               + 2 * B * T * E * 2),
        ),
    )(x, g1, be1, wkv, bkv)

    # ---------- phase 2: per query tile: Q + causal flash attention + FFN --------
    c2 = functools.partial(_const_spec, grid_rank=2,
                           single_buffer=single_buffer_weights)
    param_bytes = sum(int(p.size) * p.dtype.itemsize for p in
                      (g1, be1, g2, be2, wq, bq, wo, bo, w1, b1, w2, b2))
    cost = pl.CostEstimate(
        flops=int(2 * B * T * E * E           # Q projection
                  + 2 * B * T * T * E         # causal QK^T + PV (~half of dense)
                  + 2 * B * T * E * E         # output projection
                  + 16 * B * T * E * E),      # FFN  E -> 4E -> E
        transcendentals=int(B * H * T * T // 2),
        bytes_accessed=int(2 * x.size * 4          # x in + out (f32)
                           + 2 * B * T * E * 2     # K + V (bf16)
                           + param_bytes),         # weights once (not x B*nq)
    )
    return pl.pallas_call(
        functools.partial(block_kernel, n_heads=H),
        out_shape=jax.ShapeDtypeStruct((B, T, E), jnp.float32),
        grid_spec=pltpu.PrefetchScalarGridSpec(
            num_scalar_prefetch=0,
            grid=(B, nq),
            in_specs=[
                pl.BlockSpec((None, TQ, E), lambda b, qi: (b, qi, 0)),       # x tile
                pl.BlockSpec((None, H, T, hs), lambda b, qi: (b, 0, 0, 0)),  # K heads
                pl.BlockSpec((None, H, T, hs), lambda b, qi: (b, 0, 0, 0)),  # V heads
                c2((1, E)), c2((1, E)), c2((1, E)), c2((1, E)),   # ln1/ln2 gamma,beta
                c2((E, E)), c2((1, E)),                            # wq, bq
                c2((E, E)), c2((1, E)),                            # wo, bo
                c2((E, H4)), c2((1, H4)),                          # w1, b1
                c2((H4, E)), c2((1, E)),                           # w2, b2
            ],
            out_specs=pl.BlockSpec((None, TQ, E), lambda b, qi: (b, qi, 0)),
            scratch_shapes=[pltpu.VMEM((H, TQ, 1), jnp.float32),   # m (running max)
                            pltpu.VMEM((H, TQ, 1), jnp.float32),   # l (running sum)
                            pltpu.VMEM((H, TQ, hs), jnp.float32)], # acc
        ),
        compiler_params=pltpu.CompilerParams(
            dimension_semantics=("parallel", "parallel"),
            vmem_limit_bytes=vmem_limit,
        ),
        cost_estimate=cost,
    )(x, k_heads, v_heads, g1, be1, g2, be2, wq, bq, wo, bo, w1, b1, w2, b2)


def block_forward(x, params, *, n_heads, q_tile=128):
    try:
        return _forward(x, params, n_heads=n_heads, q_tile=q_tile,
                        single_buffer_weights=True)
    except Exception:
        # pl.Buffered(1) (single-buffered constant weights) not supported by this
        # jax/Mosaic version -> fall back to default double buffering.
        return _forward(x, params, n_heads=n_heads, q_tile=q_tile,
                        single_buffer_weights=False)


# ----------------------------- pure-JAX reference --------------------------------

def reference_forward(x, params, *, n_heads):
    """fp32 reference (weights upcast from the stored bf16)."""
    (g1, be1, g2, be2, wq, bq, wkv, bkv, wo, bo, w1, b1, w2, b2) = params
    B, T, E = x.shape
    hs = E // n_heads
    f32 = jnp.float32
    wq_, wkv_, wo_, w1_, w2_ = (w.astype(f32) for w in (wq, wkv, wo, w1, w2))
    wk_, wv_ = wkv_[:, :E], wkv_[:, E:]
    bk_, bv_ = bkv[:, :E], bkv[:, E:]

    def ln(v, g, b):
        mu = jnp.mean(v, -1, keepdims=True)
        var = jnp.mean((v - mu) ** 2, -1, keepdims=True)
        return (v - mu) / jnp.sqrt(var + 1e-5) * g + b

    l1 = ln(x, g1[0], be1[0])
    q = l1 @ wq_ + bq[0]
    k = l1 @ wk_ + bk_[0]
    v = l1 @ wv_ + bv_[0]
    q = q.reshape(B, T, n_heads, hs).transpose(0, 2, 1, 3)
    k = k.reshape(B, T, n_heads, hs).transpose(0, 2, 1, 3)
    v = v.reshape(B, T, n_heads, hs).transpose(0, 2, 1, 3)
    s = jnp.einsum("bhqd,bhkd->bhqk", q, k) / math.sqrt(hs)
    mask = jnp.tril(jnp.ones((T, T), bool))
    s = jnp.where(mask, s, -1e30)
    p = jax.nn.softmax(s, axis=-1)
    att = jnp.einsum("bhqk,bhkd->bhqd", p, v).transpose(0, 2, 1, 3).reshape(B, T, E)
    x1 = x + att @ wo_ + bo[0]
    l2 = ln(x1, g2[0], be2[0])
    ff = jnp.maximum(l2 @ w1_ + b1[0], 0.0) @ w2_ + b2[0]
    return x1 + ff


if __name__ == "__main__":
    B, T, E, n_heads = 2, 8, 32, 4      # context=8, embed_size=32, head_size=8
    H4 = 4 * E

    key = jax.random.PRNGKey(0)
    ks = jax.random.split(key, 16)

    def w(k, shape, scale=0.05):
        return jax.random.normal(k, shape, jnp.float32) * scale

    bf16 = jnp.bfloat16
    wq, wk, wv = w(ks[0], (E, E)), w(ks[2], (E, E)), w(ks[4], (E, E))
    bq, bk, bv = w(ks[1], (1, E)), w(ks[3], (1, E)), w(ks[5], (1, E))

    params = (
        jnp.ones((1, E), jnp.float32),                        # ln1 gamma
        jnp.zeros((1, E), jnp.float32),                       # ln1 beta
        jnp.ones((1, E), jnp.float32),                        # ln2 gamma
        jnp.zeros((1, E), jnp.float32),                       # ln2 beta
        wq.astype(bf16), bq,                                  # wq (E,E) bf16, bq
        jnp.concatenate([wk, wv], axis=1).astype(bf16),       # wkv (E, 2E) bf16
        jnp.concatenate([bk, bv], axis=1),                    # bkv (1, 2E) f32
        w(ks[6], (E, E)).astype(bf16), w(ks[7], (1, E)),      # wo, bo
        w(ks[8], (E, H4)).astype(bf16), w(ks[9], (1, H4)),    # w1, b1
        w(ks[10], (H4, E)).astype(bf16), w(ks[11], (1, E)),   # w2, b2
    )

    x = jax.random.normal(ks[12], (B, T, E), jnp.float32)

    out = jax.block_until_ready(block_forward(x, params, n_heads=n_heads))
    ref = reference_forward(x, params, n_heads=n_heads)

    assert out.shape == (B, T, E)
    max_err = float(jnp.max(jnp.abs(out - ref)))
    # bf16 MXU operands + bf16 K/V cache => relaxed tolerance vs the fp32 reference.
    assert jnp.allclose(out, ref, atol=2e-2, rtol=2e-2), f"mismatch: {max_err}"

    print("KERNEL_OK")
</pallas_src>

<mosaic_0001>
module attributes {stable_mosaic.version = 11 : i64} {
  func.func @kv_project_kernel(%arg0: i32, %arg1: memref<1x8x32xf32, #tpu.memory_space<vmem>>, %arg2: memref<1x32xf32, #tpu.memory_space<vmem>>, %arg3: memref<1x32xf32, #tpu.memory_space<vmem>>, %arg4: memref<32x64xbf16, #tpu.memory_space<vmem>>, %arg5: memref<1x64xf32, #tpu.memory_space<vmem>>, %arg6: memref<1x4x8x8xbf16, #tpu.memory_space<vmem>>, %arg7: memref<1x4x8x8xbf16, #tpu.memory_space<vmem>>) attributes {dimension_semantics = [#tpu.dimension_semantics<parallel>], iteration_bounds = array<i64: 2>, scalar_prefetch = 0 : i64, scratch_operands = 0 : i64, tpu.core_type = #tpu.core_type<tc>, window_params = [{transform_indices = @transform_0, window_bounds = array<i64: 1, 8, 32>}, {pipeline_mode = #tpu.pipeline_mode<synchronous>, transform_indices = @transform_1, window_bounds = array<i64: 1, 32>}, {pipeline_mode = #tpu.pipeline_mode<synchronous>, transform_indices = @transform_2, window_bounds = array<i64: 1, 32>}, {pipeline_mode = #tpu.pipeline_mode<synchronous>, transform_indices = @transform_3, window_bounds = array<i64: 32, 64>}, {pipeline_mode = #tpu.pipeline_mode<synchronous>, transform_indices = @transform_4, window_bounds = array<i64: 1, 64>}, {transform_indices = @transform_5, window_bounds = array<i64: 1, 4, 8, 8>}, {transform_indices = @transform_6, window_bounds = array<i64: 1, 4, 8, 8>}]} {
    %c0 = arith.constant 0 : index
    %c0_0 = arith.constant 0 : index
    %c0_1 = arith.constant 0 : index
    %0 = vector.load %arg1[%c0, %c0_0, %c0_1] : memref<1x8x32xf32, #tpu.memory_space<vmem>>, vector<1x8x32xf32>
    %1 = vector.shape_cast %0 : vector<1x8x32xf32> to vector<8x32xf32>
    %c0_2 = arith.constant 0 : index
    %c0_3 = arith.constant 0 : index
    %2 = vector.load %arg2[%c0_2, %c0_3] : memref<1x32xf32, #tpu.memory_space<vmem>>, vector<1x32xf32>
    %c0_4 = arith.constant 0 : index
    %c0_5 = arith.constant 0 : index
    %3 = vector.load %arg3[%c0_4, %c0_5] : memref<1x32xf32, #tpu.memory_space<vmem>>, vector<1x32xf32>
    %cst = arith.constant dense<0.000000e+00> : vector<8xf32>
    %4 = vector.multi_reduction <add>, %1, %cst [1] : vector<8x32xf32> to vector<8xf32>
    %5 = vector.shape_cast %4 : vector<8xf32> to vector<8x1xf32>
    %cst_6 = arith.constant 3.200000e+01 : f32
    %6 = vector.broadcast %cst_6 : f32 to vector<8x1xf32>
    %7 = arith.divf %5, %6 : vector<8x1xf32>
    %8 = vector.broadcast %7 : vector<8x1xf32> to vector<8x32xf32>
    %9 = arith.subf %1, %8 : vector<8x32xf32>
    %10 = arith.mulf %9, %9 : vector<8x32xf32>
    %cst_7 = arith.constant dense<0.000000e+00> : vector<8xf32>
    %11 = vector.multi_reduction <add>, %10, %cst_7 [1] : vector<8x32xf32> to vector<8xf32>
    %12 = vector.shape_cast %11 : vector<8xf32> to vector<8x1xf32>
    %cst_8 = arith.constant 3.200000e+01 : f32
    %13 = vector.broadcast %cst_8 : f32 to vector<8x1xf32>
    %14 = arith.divf %12, %13 : vector<8x1xf32>
    %15 = vector.broadcast %7 : vector<8x1xf32> to vector<8x32xf32>
    %16 = arith.subf %1, %15 : vector<8x32xf32>
    %cst_9 = arith.constant 9.99999974E-6 : f32
    %17 = vector.broadcast %cst_9 : f32 to vector<8x1xf32>
    %18 = arith.addf %14, %17 : vector<8x1xf32>
    %19 = math.rsqrt %18 : vector<8x1xf32>
    %20 = vector.broadcast %19 : vector<8x1xf32> to vector<8x32xf32>
    %21 = arith.mulf %16, %20 : vector<8x32xf32>
    %22 = vector.broadcast %2 : vector<1x32xf32> to vector<8x32xf32>
    %23 = arith.mulf %21, %22 : vector<8x32xf32>
    %24 = vector.broadcast %3 : vector<1x32xf32> to vector<8x32xf32>
    %25 = arith.addf %23, %24 : vector<8x32xf32>
    %26 = arith.truncf %25 : vector<8x32xf32> to vector<8x32xbf16>
    %c0_10 = arith.constant 0 : index
    %c0_11 = arith.constant 0 : index
    %27 = vector.load %arg4[%c0_10, %c0_11] : memref<32x64xbf16, #tpu.memory_space<vmem>>, vector<32x64xbf16>
    %cst_12 = arith.constant dense<0.000000e+00> : vector<8x64xf32>
    %28 = tpu.matmul %26, %27, %cst_12 {dimension_numbers = #tpu.dot_dimension_numbers<[1], [0], [0], [1], [0, 0, 1, 1], [], []>} : vector<8x32xbf16>, vector<32x64xbf16>, vector<8x64xf32> -> vector<8x64xf32>
    %c0_13 = arith.constant 0 : index
    %c0_14 = arith.constant 0 : index
    %29 = vector.load %arg5[%c0_13, %c0_14] : memref<1x64xf32, #tpu.memory_space<vmem>>, vector<1x64xf32>
    %30 = vector.broadcast %29 : vector<1x64xf32> to vector<8x64xf32>
    %31 = arith.addf %28, %30 : vector<8x64xf32>
    %32 = arith.truncf %31 : vector<8x64xf32> to vector<8x64xbf16>
    %33 = vector.extract_strided_slice %32 {offsets = [0, 0], sizes = [8, 32], strides = [1, 1]} : vector<8x64xbf16> to vector<8x32xbf16>
    %34 = vector.shape_cast %33 : vector<8x32xbf16> to vector<8x4x8xbf16>
    %35 = tpu.transpose %34, [1, 0, 2] : vector<8x4x8xbf16> -> vector<4x8x8xbf16>
    %c0_15 = arith.constant 0 : index
    %c0_16 = arith.constant 0 : index
    %c0_17 = arith.constant 0 : index
    %c0_18 = arith.constant 0 : index
    %36 = vector.load %arg6[%c0_15, %c0_16, %c0_17, %c0_18] : memref<1x4x8x8xbf16, #tpu.memory_space<vmem>>, vector<1x4x8x8xbf16>
    %37 = vector.shape_cast %36 : vector<1x4x8x8xbf16> to vector<4x8x8xbf16>
    %38 = vector.shape_cast %35 : vector<4x8x8xbf16> to vector<1x4x8x8xbf16>
    tpu.vector_store %arg6[%c0_15, %c0_16, %c0_17, %c0_18], %38 {strides = array<i32>} : memref<1x4x8x8xbf16, #tpu.memory_space<vmem>>, vector<1x4x8x8xbf16>,
    %39 = vector.extract_strided_slice %32 {offsets = [0, 32], sizes = [8, 32], strides = [1, 1]} : vector<8x64xbf16> to vector<8x32xbf16>
    %40 = vector.shape_cast %39 : vector<8x32xbf16> to vector<8x4x8xbf16>
    %41 = tpu.transpose %40, [1, 0, 2] : vector<8x4x8xbf16> -> vector<4x8x8xbf16>
    %c0_19 = arith.constant 0 : index
    %c0_20 = arith.constant 0 : index
    %c0_21 = arith.constant 0 : index
    %c0_22 = arith.constant 0 : index
    %42 = vector.load %arg7[%c0_19, %c0_20, %c0_21, %c0_22] : memref<1x4x8x8xbf16, #tpu.memory_space<vmem>>, vector<1x4x8x8xbf16>
    %43 = vector.shape_cast %42 : vector<1x4x8x8xbf16> to vector<4x8x8xbf16>
    %44 = vector.shape_cast %41 : vector<4x8x8xbf16> to vector<1x4x8x8xbf16>
    tpu.vector_store %arg7[%c0_19, %c0_20, %c0_21, %c0_22], %44 {strides = array<i32>} : memref<1x4x8x8xbf16, #tpu.memory_space<vmem>>, vector<1x4x8x8xbf16>,
    return
  }
  func.func @transform_0(%arg0: i32) -> (i32, i32, i32) {
    %c0_i32 = arith.constant 0 : i32
    %c0_i32_0 = arith.constant 0 : i32
    %c0_i32_1 = arith.constant 0 : i32
    return %arg0, %c0_i32, %c0_i32_0 : i32, i32, i32
  }
  func.func @transform_1(%arg0: i32) -> (i32, i32) {
    %c0_i32 = arith.constant 0 : i32
    %c0_i32_0 = arith.constant 0 : i32
    %c0_i32_1 = arith.constant 0 : i32
    return %c0_i32, %c0_i32_0 : i32, i32
  }
  func.func @transform_2(%arg0: i32) -> (i32, i32) {
    %c0_i32 = arith.constant 0 : i32
    %c0_i32_0 = arith.constant 0 : i32
    %c0_i32_1 = arith.constant 0 : i32
    return %c0_i32, %c0_i32_0 : i32, i32
  }
  func.func @transform_3(%arg0: i32) -> (i32, i32) {
    %c0_i32 = arith.constant 0 : i32
    %c0_i32_0 = arith.constant 0 : i32
    %c0_i32_1 = arith.constant 0 : i32
    return %c0_i32, %c0_i32_0 : i32, i32
  }
  func.func @transform_4(%arg0: i32) -> (i32, i32) {
    %c0_i32 = arith.constant 0 : i32
    %c0_i32_0 = arith.constant 0 : i32
    %c0_i32_1 = arith.constant 0 : i32
    return %c0_i32, %c0_i32_0 : i32, i32
  }
  func.func @transform_5(%arg0: i32) -> (i32, i32, i32, i32) {
    %c0_i32 = arith.constant 0 : i32
    %c0_i32_0 = arith.constant 0 : i32
    %c0_i32_1 = arith.constant 0 : i32
    %c0_i32_2 = arith.constant 0 : i32
    return %arg0, %c0_i32, %c0_i32_0, %c0_i32_1 : i32, i32, i32, i32
  }
  func.func @transform_6(%arg0: i32) -> (i32, i32, i32, i32) {
    %c0_i32 = arith.constant 0 : i32
    %c0_i32_0 = arith.constant 0 : i32
    %c0_i32_1 = arith.constant 0 : i32
    %c0_i32_2 = arith.constant 0 : i32
    return %arg0, %c0_i32, %c0_i32_0, %c0_i32_1 : i32, i32, i32, i32
  }
}

module attributes {stable_mosaic.version = 11 : i64} {
  func.func @kv_project_kernel(%arg0: i32, %arg1: memref<1x8x32xf32, #tpu.memory_space<vmem>>, %arg2: memref<1x32xf32, #tpu.memory_space<vmem>>, %arg3: memref<1x32xf32, #tpu.memory_space<vmem>>, %arg4: memref<32x64xbf16, #tpu.memory_space<vmem>>, %arg5: memref<1x64xf32, #tpu.memory_space<vmem>>, %arg6: memref<1x4x8x8xbf16, #tpu.memory_space<vmem>>, %arg7: memref<1x4x8x8xbf16, #tpu.memory_space<vmem>>) attributes {dimension_semantics = [#tpu.dimension_semantics<parallel>], iteration_bounds = array<i64: 2>, scalar_prefetch = 0 : i64, scratch_operands = 0 : i64, tpu.core_type = #tpu.core_type<tc>, window_params = [{transform_indices = @transform_0, window_bounds = array<i64: 1, 8, 32>}, {pipeline_mode = #tpu.pipeline_mode<synchronous>, transform_indices = @transform_1, window_bounds = array<i64: 1, 32>}, {pipeline_mode = #tpu.pipeline_mode<synchronous>, transform_indices = @transform_2, window_bounds = array<i64: 1, 32>}, {pipeline_mode = #tpu.pipeline_mode<synchronous>, transform_indices = @transform_3, window_bounds = array<i64: 32, 64>}, {pipeline_mode = #tpu.pipeline_mode<synchronous>, transform_indices = @transform_4, window_bounds = array<i64: 1, 64>}, {transform_indices = @transform_5, window_bounds = array<i64: 1, 4, 8, 8>}, {transform_indices = @transform_6, window_bounds = array<i64: 1, 4, 8, 8>}]} {
    %c0 = arith.constant 0 : index
    %c0_0 = arith.constant 0 : index
    %c0_1 = arith.constant 0 : index
    %0 = vector.load %arg1[%c0, %c0_0, %c0_1] : memref<1x8x32xf32, #tpu.memory_space<vmem>>, vector<1x8x32xf32>
    %1 = vector.shape_cast %0 : vector<1x8x32xf32> to vector<8x32xf32>
    %c0_2 = arith.constant 0 : index
    %c0_3 = arith.constant 0 : index
    %2 = vector.load %arg2[%c0_2, %c0_3] : memref<1x32xf32, #tpu.memory_space<vmem>>, vector<1x32xf32>
    %c0_4 = arith.constant 0 : index
    %c0_5 = arith.constant 0 : index
    %3 = vector.load %arg3[%c0_4, %c0_5] : memref<1x32xf32, #tpu.memory_space<vmem>>, vector<1x32xf32>
    %cst = arith.constant dense<0.000000e+00> : vector<8xf32>
    %4 = vector.multi_reduction <add>, %1, %cst [1] : vector<8x32xf32> to vector<8xf32>
    %5 = vector.shape_cast %4 : vector<8xf32> to vector<8x1xf32>
    %cst_6 = arith.constant 3.200000e+01 : f32
    %6 = vector.broadcast %cst_6 : f32 to vector<8x1xf32>
    %7 = arith.divf %5, %6 : vector<8x1xf32>
    %8 = vector.broadcast %7 : vector<8x1xf32> to vector<8x32xf32>
    %9 = arith.subf %1, %8 : vector<8x32xf32>
    %10 = arith.mulf %9, %9 : vector<8x32xf32>
    %cst_7 = arith.constant dense<0.000000e+00> : vector<8xf32>
    %11 = vector.multi_reduction <add>, %10, %cst_7 [1] : vector<8x32xf32> to vector<8xf32>
    %12 = vector.shape_cast %11 : vector<8xf32> to vector<8x1xf32>
    %cst_8 = arith.constant 3.200000e+01 : f32
    %13 = vector.broadcast %cst_8 : f32 to vector<8x1xf32>
    %14 = arith.divf %12, %13 : vector<8x1xf32>
    %15 = vector.broadcast %7 : vector<8x1xf32> to vector<8x32xf32>
    %16 = arith.subf %1, %15 : vector<8x32xf32>
    %cst_9 = arith.constant 9.99999974E-6 : f32
    %17 = vector.broadcast %cst_9 : f32 to vector<8x1xf32>
    %18 = arith.addf %14, %17 : vector<8x1xf32>
    %19 = math.rsqrt %18 : vector<8x1xf32>
    %20 = vector.broadcast %19 : vector<8x1xf32> to vector<8x32xf32>
    %21 = arith.mulf %16, %20 : vector<8x32xf32>
    %22 = vector.broadcast %2 : vector<1x32xf32> to vector<8x32xf32>
    %23 = arith.mulf %21, %22 : vector<8x32xf32>
    %24 = vector.broadcast %3 : vector<1x32xf32> to vector<8x32xf32>
    %25 = arith.addf %23, %24 : vector<8x32xf32>
    %26 = arith.truncf %25 : vector<8x32xf32> to vector<8x32xbf16>
    %c0_10 = arith.constant 0 : index
    %c0_11 = arith.constant 0 : index
    %27 = vector.load %arg4[%c0_10, %c0_11] : memref<32x64xbf16, #tpu.memory_space<vmem>>, vector<32x64xbf16>
    %cst_12 = arith.constant dense<0.000000e+00> : vector<8x64xf32>
    %28 = tpu.matmul %26, %27, %cst_12 {dimension_numbers = #tpu.dot_dimension_numbers<[1], [0], [0], [1], [0, 0, 1, 1], [], []>} : vector<8x32xbf16>, vector<32x64xbf16>, vector<8x64xf32> -> vector<8x64xf32>
    %c0_13 = arith.constant 0 : index
    %c0_14 = arith.constant 0 : index
    %29 = vector.load %arg5[%c0_13, %c0_14] : memref<1x64xf32, #tpu.memory_space<vmem>>, vector<1x64xf32>
    %30 = vector.broadcast %29 : vector<1x64xf32> to vector<8x64xf32>
    %31 = arith.addf %28, %30 : vector<8x64xf32>
    %32 = arith.truncf %31 : vector<8x64xf32> to vector<8x64xbf16>
    %33 = vector.extract_strided_slice %32 {offsets = [0, 0], sizes = [8, 32], strides = [1, 1]} : vector<8x64xbf16> to vector<8x32xbf16>
    %34 = vector.shape_cast %33 : vector<8x32xbf16> to vector<8x4x8xbf16>
    %35 = tpu.transpose %34, [1, 0, 2] : vector<8x4x8xbf16> -> vector<4x8x8xbf16>
    %c0_15 = arith.constant 0 : index
    %c0_16 = arith.constant 0 : index
    %c0_17 = arith.constant 0 : index
    %c0_18 = arith.constant 0 : index
    %36 = vector.load %arg6[%c0_15, %c0_16, %c0_17, %c0_18] : memref<1x4x8x8xbf16, #tpu.memory_space<vmem>>, vector<1x4x8x8xbf16>
    %37 = vector.shape_cast %36 : vector<1x4x8x8xbf16> to vector<4x8x8xbf16>
    %38 = vector.shape_cast %35 : vector<4x8x8xbf16> to vector<1x4x8x8xbf16>
    tpu.vector_store %arg6[%c0_15, %c0_16, %c0_17, %c0_18], %38 {strides = array<i32>} : memref<1x4x8x8xbf16, #tpu.memory_space<vmem>>, vector<1x4x8x8xbf16>,
    %39 = vector.extract_strided_slice %32 {offsets = [0, 32], sizes = [8, 32], strides = [1, 1]} : vector<8x64xbf16> to vector<8x32xbf16>
    %40 = vector.shape_cast %39 : vector<8x32xbf16> to vector<8x4x8xbf16>
    %41 = tpu.transpose %40, [1, 0, 2] : vector<8x4x8xbf16> -> vector<4x8x8xbf16>
    %c0_19 = arith.constant 0 : index
    %c0_20 = arith.constant 0 : index
    %c0_21 = arith.constant 0 : index
    %c0_22 = arith.constant 0 : index
    %42 = vector.load %arg7[%c0_19, %c0_20, %c0_21, %c0_22] : memref<1x4x8x8xbf16, #tpu.memory_space<vmem>>, vector<1x4x8x8xbf16>
    %43 = vector.shape_cast %42 : vector<1x4x8x8xbf16> to vector<4x8x8xbf16>
    %44 = vector.shape_cast %41 : vector<4x8x8xbf16> to vector<1x4x8x8xbf16>
    tpu.vector_store %arg7[%c0_19, %c0_20, %c0_21, %c0_22], %44 {strides = array<i32>} : memref<1x4x8x8xbf16, #tpu.memory_space<vmem>>, vector<1x4x8x8xbf16>,
    return
  }
  func.func @transform_0(%arg0: i32) -> (i32, i32, i32) {
    %c0_i32 = arith.constant 0 : i32
    %c0_i32_0 = arith.constant 0 : i32
    %c0_i32_1 = arith.constant 0 : i32
    return %arg0, %c0_i32, %c0_i32_0 : i32, i32, i32
  }
  func.func @transform_1(%arg0: i32) -> (i32, i32) {
    %c0_i32 = arith.constant 0 : i32
    %c0_i32_0 = arith.constant 0 : i32
    %c0_i32_1 = arith.constant 0 : i32
    return %c0_i32, %c0_i32_0 : i32, i32
  }
  func.func @transform_2(%arg0: i32) -> (i32, i32) {
    %c0_i32 = arith.constant 0 : i32
    %c0_i32_0 = arith.constant 0 : i32
    %c0_i32_1 = arith.constant 0 : i32
    return %c0_i32, %c0_i32_0 : i32, i32
  }
  func.func @transform_3(%arg0: i32) -> (i32, i32) {
    %c0_i32 = arith.constant 0 : i32
    %c0_i32_0 = arith.constant 0 : i32
    %c0_i32_1 = arith.constant 0 : i32
    return %c0_i32, %c0_i32_0 : i32, i32
  }
  func.func @transform_4(%arg0: i32) -> (i32, i32) {
    %c0_i32 = arith.constant 0 : i32
    %c0_i32_0 = arith.constant 0 : i32
    %c0_i32_1 = arith.constant 0 : i32
    return %c0_i32, %c0_i32_0 : i32, i32
  }
  func.func @transform_5(%arg0: i32) -> (i32, i32, i32, i32) {
    %c0_i32 = arith.constant 0 : i32
    %c0_i32_0 = arith.constant 0 : i32
    %c0_i32_1 = arith.constant 0 : i32
    %c0_i32_2 = arith.constant 0 : i32
    return %arg0, %c0_i32, %c0_i32_0, %c0_i32_1 : i32, i32, i32, i32
  }
  func.func @transform_6(%arg0: i32) -> (i32, i32, i32, i32) {
    %c0_i32 = arith.constant 0 : i32
    %c0_i32_0 = arith.constant 0 : i32
    %c0_i32_1 = arith.constant 0 : i32
    %c0_i32_2 = arith.constant 0 : i32
    return %arg0, %c0_i32, %c0_i32_0, %c0_i32_1 : i32, i32, i32, i32
  }
}

</mosaic_0001>

<llo_original>
// kernel: tpu_custom_call.1
$region0: #{tpu_custom_call.1}
  #allocation0 [shape = 'u32[]', space=smem, size = 0x4, offset = 0x4, fixed_abs, tag = 'smem constant byte address 0x4 - core index']
  #allocation1 [shape = 'u32[72,128]{1,0:T(1,128)}', space=vmem, size = 0x9000, scoped, tag = 'internal scratch']
  %s0 = inlined_call_operand.hbm [shape: f32[2,8,32], index: 0, kind: input, shape index: {}]
  %s1 = inlined_call_operand.hbm [shape: f32[1,32], index: 1, kind: input, shape index: {}]
  %s2 = inlined_call_operand.vmem [shape: f32[1,32], index: 2, kind: input, shape index: {}]
  %s3 = inlined_call_operand.hbm [shape: bf16[32,64], index: 3, kind: input, shape index: {}]
  %s4 = inlined_call_operand.vmem [shape: f32[1,64], index: 4, kind: input, shape index: {}]
  %s5 = inlined_call_operand.hbm [shape: bf16[2,4,8,8], index: 5, kind: output, shape index: {0}]
  %s6 = inlined_call_operand.hbm [shape: bf16[2,4,8,8], index: 6, kind: output, shape index: {1}]
  %7 = xla_tuple %s5, %s6
  %s8 = sld [smem:[#allocation0]]
  $region73: #{tpu_custom_call.1} parent=0
    _
  %s10 = ssub.s32 1, %s8
  %s11 = scalar_select 0, %s10, %s8
  $region1: #{tpu_custom_call.1} parent=0
    #allocation2 [shape = 'u8[8192]{0}', space=vmem, size = 0x2000, scoped, tag = 'input window, operand 0']
    #allocation3 [shape = 's32[2]{0}', space=sflag, size = 0x8, scoped, tag = 'scoped memory for tpu_custom_call.1']
    #allocation4 [shape = 's32[2]{0}', space=sflag, size = 0x8, scoped, tag = 'scoped memory for tpu_custom_call.1']
    #allocation5 [shape = 'u8[512]{0}', space=vmem, size = 0x400, scoped, tag = 'input window, operand 1, single buffered']
    #allocation6 [shape = 's32[1]{0}', space=sflag, size = 0x4, scoped, tag = 'scoped memory for tpu_custom_call.1']
    #allocation7 [shape = 'u8[8192]{0}', space=vmem, size = 0x2000, scoped, tag = 'input window, operand 3, single buffered']
    #allocation8 [shape = 'u8[16384]{0}', space=vmem, size = 0x4000, scoped, tag = 'output window, operand 0']
    #allocation9 [shape = 'u8[16384]{0}', space=vmem, size = 0x4000, scoped, tag = 'output window, operand 1']
    #allocation10 [shape = 's32[2]{0}', space=sflag, size = 0x8, scoped, tag = 'scoped memory for tpu_custom_call.1']
    %12 = vsyncpa [#allocation3], 0
    %s13 = scalar_lea.sflag [#allocation3], 1
    %14 = vsyncpa %s13, 0
    %15 = vsyncpa [#allocation6], 0
    %16 = vsyncpa [#allocation4], 0
    %s17 = scalar_lea.sflag [#allocation4], 1
    %18 = vsyncpa %s17, 0
    %19 = vsyncpa [#allocation10], 0
    %s20 = scalar_lea.sflag [#allocation10], 1
    %21 = vsyncpa %s20, 0
    loop: start=0, step=1, limit=4
    $region2: #{tpu_custom_call.1} parent=1 // loop_pre_header
      _
    $region3: #{tpu_custom_call.1} parent=1 // loop_header
      %s23 = sphi 0, %s27
      %p24 = scmp.ge.s32.totalorder %s23, 4
      %s33 = sphi 0, %s35
      %s36 = sphi 0, %s33
      %s37 = sphi 0, %s36
      %s53 = sphi 0, %s37
      %s57 = sphi 0, %s57
      %s59 = sphi 0, %s57
      %s60 = sphi 0, %s59
      %s74 = sphi 0, %s60
      %s78 = sphi 0, %s78
      %s80 = sphi 0, %s78
      %s81 = sphi 0, %s80
      %s95 = sphi 0, %s81
      %s99 = sphi 0, %s99
      %s101 = sphi 0, %s99
      %s102 = sphi 0, %s101
      %s116 = sphi 0, %s102
      %s120 = sphi 0, %s120
      %s122 = sphi 0, %s120
      %s123 = sphi 0, %s122
      %s137 = sphi 0, %s123
      %s143 = sphi 0, %s145
      %s146 = sphi 0, %s143
      %s147 = sphi 0, %s146
      %s163 = sphi 0, %s147
      %s169 = sphi 0, %s171
      %s172 = sphi 0, %s169
      %s173 = sphi 0, %s172
      %s189 = sphi 0, %s173
    $region4: #{tpu_custom_call.1} parent=1 // loop_header_branch
      %26 = sbr.rel (%p24) target = $region8
    $region5: #{tpu_custom_call.1} parent=1 // loop_body
      %s28 = ssub.s32 %s23, 1
      %s29 = ssub.s32 %s23, 2
      %s30 = sadd.s32 %s23, 1
      %s31 = ssub.s32 %s23, %s30
      %p32 = scmp.eq.s32.totalorder %s31, 0
      %s34 = sadd.s32 %s33, 1
      %s35 = scalar_select %p32, %s33, %s34
      %p38 = pneg %p32
      %p39 = scmp.eq.s32.totalorder %s23, 1
      %p40 = por %p38, %p39
      %p41 = scmp.ne.s32.totalorder %s33, %s36
      %p42 = scmp.eq.s32.totalorder %s23, 0
      %p43 = por %p41, %p42
      %p44 = scmp.ne.s32.totalorder %s33, %s36
      %p45 = scmp.eq.s32.totalorder %s28, 1
      %p46 = por %p44, %p45
      %p47 = scmp.ne.s32.totalorder %s36, %s37
      %p48 = scmp.eq.s32.totalorder %s28, 0
      %p49 = por %p47, %p48
      %p50 = scmp.ne.s32.totalorder %s36, %s37
      %p51 = scmp.eq.s32.totalorder %s29, 1
      %p52 = por %p50, %p51
      %p54 = scmp.ne.s32.totalorder %s37, %s53
      %p55 = scmp.eq.s32.totalorder %s29, 0
      %p56 = por %p54, %p55
      %s58 = sadd.s32 %s57, 1
      %p61 = scmp.eq.s32.totalorder %s23, 1
      %p62 = scmp.ne.s32.totalorder %s57, %s59
      %p63 = scmp.eq.s32.totalorder %s23, 0
      %p64 = por %p62, %p63
      %p65 = scmp.ne.s32.totalorder %s57, %s59
      %p66 = scmp.eq.s32.totalorder %s28, 1
      %p67 = por %p65, %p66
      %p68 = scmp.ne.s32.totalorder %s59, %s60
      %p69 = scmp.eq.s32.totalorder %s28, 0
      %p70 = por %p68, %p69
      %p71 = scmp.ne.s32.totalorder %s59, %s60
      %p72 = scmp.eq.s32.totalorder %s29, 1
      %p73 = por %p71, %p72
      %p75 = scmp.ne.s32.totalorder %s60, %s74
      %p76 = scmp.eq.s32.totalorder %s29, 0
      %p77 = por %p75, %p76
      %s79 = sadd.s32 %s78, 1
      %p82 = scmp.eq.s32.totalorder %s23, 1
      %p83 = scmp.ne.s32.totalorder %s78, %s80
      %p84 = scmp.eq.s32.totalorder %s23, 0
      %p85 = por %p83, %p84
      %p86 = scmp.ne.s32.totalorder %s78, %s80
      %p87 = scmp.eq.s32.totalorder %s28, 1
      %p88 = por %p86, %p87
      %p89 = scmp.ne.s32.totalorder %s80, %s81
      %p90 = scmp.eq.s32.totalorder %s28, 0
      %p91 = por %p89, %p90
      %p92 = scmp.ne.s32.totalorder %s80, %s81
      %p93 = scmp.eq.s32.totalorder %s29, 1
      %p94 = por %p92, %p93
      %p96 = scmp.ne.s32.totalorder %s81, %s95
      %p97 = scmp.eq.s32.totalorder %s29, 0
      %p98 = por %p96, %p97
      %s100 = sadd.s32 %s99, 1
      %p103 = scmp.eq.s32.totalorder %s23, 1
      %p104 = scmp.ne.s32.totalorder %s99, %s101
      %p105 = scmp.eq.s32.totalorder %s23, 0
      %p106 = por %p104, %p105
      %p107 = scmp.ne.s32.totalorder %s99, %s101
      %p108 = scmp.eq.s32.totalorder %s28, 1
      %p109 = por %p107, %p108
      %p110 = scmp.ne.s32.totalorder %s101, %s102
      %p111 = scmp.eq.s32.totalorder %s28, 0
      %p112 = por %p110, %p111
      %p113 = scmp.ne.s32.totalorder %s101, %s102
      %p114 = scmp.eq.s32.totalorder %s29, 1
      %p115 = por %p113, %p114
      %p117 = scmp.ne.s32.totalorder %s102, %s116
      %p118 = scmp.eq.s32.totalorder %s29, 0
      %p119 = por %p117, %p118
      %s121 = sadd.s32 %s120, 1
      %p124 = scmp.eq.s32.totalorder %s23, 1
      %p125 = scmp.ne.s32.totalorder %s120, %s122
      %p126 = scmp.eq.s32.totalorder %s23, 0
      %p127 = por %p125, %p126
      %p128 = scmp.ne.s32.totalorder %s120, %s122
      %p129 = scmp.eq.s32.totalorder %s28, 1
      %p130 = por %p128, %p129
      %p131 = scmp.ne.s32.totalorder %s122, %s123
      %p132 = scmp.eq.s32.totalorder %s28, 0
      %p133 = por %p131, %p132
      %p134 = scmp.ne.s32.totalorder %s122, %s123
      %p135 = scmp.eq.s32.totalorder %s29, 1
      %p136 = por %p134, %p135
      %p138 = scmp.ne.s32.totalorder %s123, %s137
      %p139 = scmp.eq.s32.totalorder %s29, 0
      %p140 = por %p138, %p139
      %s141 = ssub.s32 %s23, %s30
      %p142 = scmp.eq.s32.totalorder %s141, 0
      %s144 = sadd.s32 %s143, 1
      %s145 = scalar_select %p142, %s143, %s144
      %p148 = pneg %p142
      %p149 = scmp.eq.s32.totalorder %s23, 1
      %p150 = por %p148, %p149
      %p151 = scmp.ne.s32.totalorder %s143, %s146
      %p152 = scmp.eq.s32.totalorder %s23, 0
      %p153 = por %p151, %p152
      %p154 = scmp.ne.s32.totalorder %s143, %s146
      %p155 = scmp.eq.s32.totalorder %s28, 1
      %p156 = por %p154, %p155
      %p157 = scmp.ne.s32.totalorder %s146, %s147
      %p158 = scmp.eq.s32.totalorder %s28, 0
      %p159 = por %p157, %p158
      %p160 = scmp.ne.s32.totalorder %s146, %s147
      %p161 = scmp.eq.s32.totalorder %s29, 1
      %p162 = por %p160, %p161
      %p164 = scmp.ne.s32.totalorder %s147, %s163
      %p165 = scmp.eq.s32.totalorder %s29, 0
      %p166 = por %p164, %p165
      %s167 = ssub.s32 %s23, %s30
      %p168 = scmp.eq.s32.totalorder %s167, 0
      %s170 = sadd.s32 %s169, 1
      %s171 = scalar_select %p168, %s169, %s170
      %p174 = pneg %p168
      %p175 = scmp.eq.s32.totalorder %s23, 1
      %p176 = por %p174, %p175
      %p177 = scmp.ne.s32.totalorder %s169, %s172
      %p178 = scmp.eq.s32.totalorder %s23, 0
      %p179 = por %p177, %p178
      %p180 = scmp.ne.s32.totalorder %s169, %s172
      %p181 = scmp.eq.s32.totalorder %s28, 1
      %p182 = por %p180, %p181
      %p183 = scmp.ne.s32.totalorder %s172, %s173
      %p184 = scmp.eq.s32.totalorder %s28, 0
      %p185 = por %p183, %p184
      %p186 = scmp.ne.s32.totalorder %s172, %s173
      %p187 = scmp.eq.s32.totalorder %s29, 1
      %p188 = por %p186, %p187
      %p190 = scmp.ne.s32.totalorder %s173, %s189
      %p191 = scmp.eq.s32.totalorder %s29, 0
      %p192 = por %p190, %p191
      %p193 = scmp.le.s32.totalorder 1, %s23
      %p194 = scmp.lt.s32.totalorder %s23, 3
      %p195 = pnand %p193, %p194
      %p196 = pneg %p195
      // Predicated region
      $region9: #{tpu_custom_call.1} parent=5 // pred_check
        _
      $region10: #{tpu_custom_call.1} parent=5 // pred_check_branch
        %198 = sbr.rel (%p195) target = $region12
      $region11: #{tpu_custom_call.1} parent=5 // pred_region
        %s199 = ssub.s32 %s23, 1
        // Predicated region
        $region13: #{tpu_custom_call.1} parent=11 // pred_check
          %p200 = pneg %p70
        $region14: #{tpu_custom_call.1} parent=11 // pred_check_branch
          %202 = sbr.rel (%p200) target = $region16
        $region15: #{tpu_custom_call.1} parent=11 // pred_region
          %204 = vsyncadd [#allocation6], 0
          %s206 = sshll.u32 %s1, 4
          %s207 = int_to_ptr.hbm [resolvable:$true] %s206
          %s208 = sshll.u32 [#allocation5], 4
          %s209 = int_to_ptr.vmem [resolvable:$true] %s208
          %211 = dma.hbm_to_vmem [thread:$0]  %s207, 16, %s209, [#allocation6]
        $region16: #{tpu_custom_call.1} parent=11 // pred_fallthru
          _
        // Predicated region
        $region17: #{tpu_custom_call.1} parent=11 // pred_check
          %p212 = pneg %p91
        $region18: #{tpu_custom_call.1} parent=11 // pred_check_branch
          %214 = sbr.rel (%p212) target = $region20
        $region19: #{tpu_custom_call.1} parent=11 // pred_region
          _
        $region20: #{tpu_custom_call.1} parent=11 // pred_fallthru
          _
        // Predicated region
        $region21: #{tpu_custom_call.1} parent=11 // pred_check
          %p215 = pneg %p112
        $region22: #{tpu_custom_call.1} parent=11 // pred_check_branch
          %217 = sbr.rel (%p215) target = $region24
        $region23: #{tpu_custom_call.1} parent=11 // pred_region
          %219 = vsyncadd [#allocation6], 0
          %s220 = sshll.u32 %s3, 4
          %s221 = int_to_ptr.hbm [resolvable:$true] %s220
          %s222 = sshll.u32 [#allocation7], 4
          %s223 = int_to_ptr.vmem [resolvable:$true] %s222
          %228 = dma.hbm_to_vmem [thread:$0]  %s221, 256, %s223, [#allocation6], 64, 64, 4
        $region24: #{tpu_custom_call.1} parent=11 // pred_fallthru
          _
        // Predicated region
        $region25: #{tpu_custom_call.1} parent=11 // pred_check
          %p229 = pneg %p133
        $region26: #{tpu_custom_call.1} parent=11 // pred_check_branch
          %231 = sbr.rel (%p229) target = $region28
        $region27: #{tpu_custom_call.1} parent=11 // pred_region
          _
        $region28: #{tpu_custom_call.1} parent=11 // pred_fallthru
          _
      $region12: #{tpu_custom_call.1} parent=5 // pred_fallthru
        _
      %p232 = scmp.lt.s32.totalorder %s23, 2
      // Predicated region
      $region29: #{tpu_custom_call.1} parent=5 // pred_check
        %p233 = pneg %p232
      $region30: #{tpu_custom_call.1} parent=5 // pred_check_branch
        %235 = sbr.rel (%p233) target = $region32
      $region31: #{tpu_custom_call.1} parent=5 // pred_region
        // Predicated region
        $region33: #{tpu_custom_call.1} parent=31 // pred_check
          %p236 = pneg %p43
        $region34: #{tpu_custom_call.1} parent=31 // pred_check_branch
          %238 = sbr.rel (%p236) target = $region36
        $region35: #{tpu_custom_call.1} parent=31 // pred_region
          %s239 = sand.u32 %s33, 1
          %s240 = scalar_lea.sflag [#allocation3], %s239
          %s241 = sand.u32 %s33, 1
          %s242 = smul.addr %s241, 8
          %s243 = scalar_lea.vmem [#allocation2], %s242
          %245 = vsyncadd %s240, 0
          %s246 = smul.addr %s23, 8
          %s247 = scalar_lea.hbm %s0, %s246
          %s249 = sshll.u32 %s247, 4
          %s250 = int_to_ptr.hbm [resolvable:$true] %s249
          %s251 = sshll.u32 %s243, 4
          %s252 = int_to_ptr.vmem [resolvable:$true] %s251
          %254 = dma.hbm_to_vmem [thread:$0]  %s250, 128, %s252, %s240
        $region36: #{tpu_custom_call.1} parent=31 // pred_fallthru
          _
      $region32: #{tpu_custom_call.1} parent=5 // pred_fallthru
        _
      %p255 = scmp.le.s32.totalorder 1, %s23
      %p256 = scmp.lt.s32.totalorder %s23, 3
      %p257 = pnand %p255, %p256
      %p258 = pneg %p257
      // Predicated region
      $region37: #{tpu_custom_call.1} parent=5 // pred_check
        _
      $region38: #{tpu_custom_call.1} parent=5 // pred_check_branch
        %260 = sbr.rel (%p257) target = $region40
      $region39: #{tpu_custom_call.1} parent=5 // pred_region
        %s261 = ssub.s32 %s23, 1
        %s262 = sand.u32 %s36, 1
        %s263 = scalar_lea.sflag [#allocation3], %s262
        %s264 = sand.u32 %s36, 1
        %s265 = smul.addr %s264, 8
        %s266 = scalar_lea.vmem [#allocation2], %s265
        // Predicated region
        $region41: #{tpu_custom_call.1} parent=39 // pred_check
          %p267 = pneg %p49
        $region42: #{tpu_custom_call.1} parent=39 // pred_check_branch
          %269 = sbr.rel (%p267) target = $region44
        $region43: #{tpu_custom_call.1} parent=39 // pred_region
          %271 = dma.done %s263, 128
        $region44: #{tpu_custom_call.1} parent=39 // pred_fallthru
          _
        // Predicated region
        $region45: #{tpu_custom_call.1} parent=39 // pred_check
          %p272 = pneg %p70
        $region46: #{tpu_custom_call.1} parent=39 // pred_check_branch
          %274 = sbr.rel (%p272) target = $region48
        $region47: #{tpu_custom_call.1} parent=39 // pred_region
          %276 = dma.done [#allocation6], 16
        $region48: #{tpu_custom_call.1} parent=39 // pred_fallthru
          _
        // Predicated region
        $region49: #{tpu_custom_call.1} parent=39 // pred_check
          %p277 = pneg %p112
        $region50: #{tpu_custom_call.1} parent=39 // pred_check_branch
          %279 = sbr.rel (%p277) target = $region52
        $region51: #{tpu_custom_call.1} parent=39 // pred_region
          %281 = dma.done [#allocation6], 256
        $region52: #{tpu_custom_call.1} parent=39 // pred_fallthru
          _
        %s282 = sand.u32 %s36, 1
        %s283 = scalar_lea.sflag [#allocation3], %s282
        %s284 = sand.u32 %s36, 1
        %s285 = smul.addr %s284, 8
        %s286 = scalar_lea.vmem [#allocation2], %s285
        %p287 = pneg %p49
        %p288 = pneg %p46
        %p289 = pneg %p70
        %p290 = pneg %p67
        %p291 = pneg %p91
        %p292 = pneg %p88
        %p293 = pneg %p112
        %p294 = pneg %p109
        %p295 = pneg %p133
        %p296 = pneg %p130
        %p297 = pneg %p159
        %p298 = pneg %p156
        %s299 = sand.u32 %s146, 1
        %s300 = scalar_lea.sflag [#allocation4], %s299
        %s301 = sand.u32 %s146, 1
        %s302 = smul.addr %s301, 16
        %s303 = scalar_lea.vmem [#allocation8], %s302
        %p304 = pneg %p185
        %p305 = pneg %p182
        %s306 = sand.u32 %s172, 1
        %s307 = scalar_lea.sflag [#allocation10], %s306
        %s308 = sand.u32 %s172, 1
        %s309 = smul.addr %s308, 16
        %s310 = scalar_lea.vmem [#allocation9], %s309
        %v312 = vld [vmem:[%s266] sm:$0xff]
        %v313 = vld [vmem:[#allocation5] sm:$0x1]
        %v314 = vld [vmem:[%s2] sm:$0x1]
        %vm315 = vcmask 261120
        %v316 = vsel %vm315, %v312, 0.0
        %317 = vadd.xlane.f32.xlu0 %v316
        %v318 = vpop.xlane.xlu0 %317
        %v319 = vrcp.pop 32.0
        %v320 = vmul.f32 32.0, %v319
        %v321 = vsub.f32 1.0, %v320
        %v322 = vmul.f32 %v319, %v321
        %v323 = vadd.f32 %v319, %v322
        %vm324 = vweird.f32 %v319
        %v325 = vsel %vm324, %v319, %v323
        %v326 = vmul.f32 %v318, %v325
        %v327 = vsub.f32 %v312, %v326
        %v328 = vmul.f32 %v327, %v327
        %v329 = vsel %vm315, %v328, 0.0
        %330 = vadd.xlane.f32.xlu0 %v329
        %v331 = vpop.xlane.xlu0 %330
        %v332 = vmul.f32 %v331, %v325
        %v333 = vadd.f32 %v332, 1e-05
        %v334 = vrsqrt.pop %v333
        %v335 = vmul.f32 %v334, %v333
        %v336 = vmul.f32 %v335, %v334
        %v337 = vmul.f32 0.5, %v336
        %v338 = vsub.f32 1.5, %v337
        %v339 = vmul.f32 %v334, %v338
        %vm340 = vweird.f32 %v333
        %vm341 = vweird.f32 %v334
        %vm342 = vmor %vm340, %vm341
        %v343 = vsel %vm342, %v334, %v339
        %v344 = vmul.f32 %v327, %v343
        %v346 = vperm.slane %v313, 0
        %v348 = vmul.f32 %v344, %v346
        %v350 = vperm.slane %v314, 0
        %v352 = vadd.f32 %v348, %v350
        %v353 = vpack.c.bf16 %v352, %v352
        %v354 = vld [vmem:[#allocation7] sm:$0xf]
        %v355 = vld [vmem:[#allocation7 + $0x4] sm:$0xf]
        %v356 = vld [vmem:[#allocation7 + $0x8] sm:$0xf]
        %v357 = vld [vmem:[#allocation7 + $0xc] sm:$0xf]
        %v358 = vld [vmem:[%s4] sm:$0x1]
        %v360 = vperm.slane %v358, 0
        %v366 = vunpack.c.l.b16 %v354
        %v367 = vunpack.c.l.b16 %v355
        %v368 = vunpack.c.l.b16 %v356
        %v369 = vunpack.c.l.b16 %v357
        %v370 = vpack.c.b16 %v367, %v366
        %v371 = vpack.c.b16 %v369, %v368
        %v375 = vsel %vm315, %v353, 0
        %377 = vmatpush.bf16.msra.mxu0 0
        %378 = vmatpush.bf16.msra.mxu0 0
        %379 = vmatpush.bf16.msra.mxu0 0
        %380 = vmatpush.bf16.msra.mxu0 0
        %381 = vmatpush.bf16.msra.mxu0 0
        %382 = vmatpush.bf16.msra.mxu0 0
        %383 = vmatpush.bf16.msra.mxu0 %v371
        %384 = vmatpush.bf16.msra.mxu0 %v370
        %385 = vmatmul.bf16.gmra.mxu0 %v375
        %v386 = vpop.f32.mrf.mxu0
        %v387 = vadd.f32 %v360, %v386
        %v388 = vpop.f32.mrf.mxu0
        %389 = vdwg.mxu0
        %v390 = vpack.c.bf16 %v387, %v387
        %392 = vrot.lane.b32.xlu0 %v390, 120
        %v393 = vpop.permute.xlu0 %392
        %394 = vrot.lane.b32.xlu0 %v390, 112
        %v395 = vpop.permute.xlu0 %394
        %396 = vrot.lane.b32.xlu0 %v390, 104
        %v397 = vpop.permute.xlu0 %396
        %v400 = vpack.i.b16 %v393, %v390
        %v401 = vshrl.u32 %v390, 16
        %v402 = vshrl.u32 %v393, 16
        %v403 = vpack.i.b16 %v402, %v401
        %v406 = vpack.i.b16 %v397, %v395
        %v407 = vshrl.u32 %v395, 16
        %v408 = vshrl.u32 %v397, 16
        %v409 = vpack.i.b16 %v408, %v407
        %v412 = vunpack.c.l.s4 1983009808
        %v413 = vunpack.c.0.s8 %v412
        %v414 = vperm.slane %v400, %v413
        %v417 = vunpack.c.l.s4 1983009808
        %v418 = vunpack.c.0.s8 %v417
        %v419 = vperm.slane %v406, %v418
        %v420 = vrot.slane %v419, 4
        %vm421 = vcmask 1047556
        %v422 = vsel %vm421, %v420, %v414
        %v423 = vrot.slane %v414, 4
        %v424 = vsel %vm421, %v419, %v423
        %v426 = vunpack.c.l.s4 1934713408
        %v427 = vunpack.c.0.s8 %v426
        %v428 = vperm.slane %v422, %v427
        %v430 = vunpack.c.l.s4 1934713408
        %v431 = vunpack.c.0.s8 %v430
        %v432 = vperm.slane %v424, %v431
        %v433 = vrot.slane %v428, 4
        %v434 = vsel %vm421, 0, %v433
        %v435 = vrot.slane %v432, 4
        %v436 = vsel %vm421, 0, %v435
        %v439 = vunpack.c.l.s4 1983009808
        %v440 = vunpack.c.0.s8 %v439
        %v441 = vperm.slane %v403, %v440
        %v444 = vunpack.c.l.s4 1983009808
        %v445 = vunpack.c.0.s8 %v444
        %v446 = vperm.slane %v409, %v445
        %v447 = vrot.slane %v446, 4
        %v448 = vsel %vm421, %v447, %v441
        %v449 = vrot.slane %v441, 4
        %v450 = vsel %vm421, %v446, %v449
        %v452 = vunpack.c.l.s4 1934713408
        %v453 = vunpack.c.0.s8 %v452
        %v454 = vperm.slane %v448, %v453
        %v456 = vunpack.c.l.s4 1934713408
        %v457 = vunpack.c.0.s8 %v456
        %v458 = vperm.slane %v450, %v457
        %v459 = vrot.slane %v454, 4
        %v460 = vsel %vm421, 0, %v459
        %v461 = vrot.slane %v458, 4
        %v462 = vsel %vm421, 0, %v461
        %v463 = vsel %vm421, %v435, %v428
        %v465 = vunpack.c.l.s4 1983009808
        %v466 = vunpack.c.0.s8 %v465
        %v467 = vperm.slane %v463, %v466
        %v468 = vrot.slane %v436, 4
        %v469 = vsel %vm421, %v468, %v434
        %v471 = vunpack.c.l.s4 1983009808
        %v472 = vunpack.c.0.s8 %v471
        %v473 = vperm.slane %v469, %v472
        %v474 = vrot.slane %v473, 4
        %v475 = vsel %vm421, %v474, %v467
        %v477 = vunpack.c.l.s4 1934713408
        %v478 = vunpack.c.0.s8 %v477
        %v479 = vperm.slane %v475, %v478
        %v480 = vrot.slane %v479, 4
        %v481 = vsel %vm421, 0, %v480
        %v482 = vsel %vm421, %v461, %v454
        %v484 = vunpack.c.l.s4 1983009808
        %v485 = vunpack.c.0.s8 %v484
        %v486 = vperm.slane %v482, %v485
        %v487 = vrot.slane %v462, 4
        %v488 = vsel %vm421, %v487, %v460
        %v490 = vunpack.c.l.s4 1983009808
        %v491 = vunpack.c.0.s8 %v490
        %v492 = vperm.slane %v488, %v491
        %v493 = vrot.slane %v492, 4
        %v494 = vsel %vm421, %v493, %v486
        %v496 = vunpack.c.l.s4 1934713408
        %v497 = vunpack.c.0.s8 %v496
        %v498 = vperm.slane %v494, %v497
        %v499 = vrot.slane %v498, 4
        %v500 = vsel %vm421, 0, %v499
        %v503 = vpack.i.b16 %v498, %v479
        %v505 = vshrl.u32 %v479, 16
        %v506 = vshrl.u32 %v498, 16
        %v507 = vpack.i.b16 %v506, %v505
        %v511 = vpack.i.b16 %v500, %v481
        %v513 = vshrl.u32 %v481, 16
        %v514 = vshrl.u32 %v500, 16
        %v515 = vpack.i.b16 %v514, %v513
        %vm517 = vcmask 60416
        %518 = vst.msk [vmem:[%s303] sm:$0xf] %vm517, %v503
        %519 = vst.msk [vmem:[%s303 + $0x4] sm:$0xf] %vm517, %v507
        %520 = vst.msk [vmem:[%s303 + $0x8] sm:$0xf] %vm517, %v511
        %521 = vst.msk [vmem:[%s303 + $0xc] sm:$0xf] %vm517, %v515
        %522 = vrot.lane.b32.xlu0 %v390, 96
        %v523 = vpop.permute.xlu0 %522
        %524 = vrot.lane.b32.xlu0 %v393, 96
        %v525 = vpop.permute.xlu0 %524
        %526 = vrot.lane.b32.xlu0 %v395, 96
        %v527 = vpop.permute.xlu0 %526
        %528 = vrot.lane.b32.xlu0 %v397, 96
        %v529 = vpop.permute.xlu0 %528
        %v532 = vpack.i.b16 %v525, %v523
        %v533 = vshrl.u32 %v523, 16
        %v534 = vshrl.u32 %v525, 16
        %v535 = vpack.i.b16 %v534, %v533
        %v538 = vpack.i.b16 %v529, %v527
        %v539 = vshrl.u32 %v527, 16
        %v540 = vshrl.u32 %v529, 16
        %v541 = vpack.i.b16 %v540, %v539
        %v544 = vunpack.c.l.s4 1983009808
        %v545 = vunpack.c.0.s8 %v544
        %v546 = vperm.slane %v532, %v545
        %v549 = vunpack.c.l.s4 1983009808
        %v550 = vunpack.c.0.s8 %v549
        %v551 = vperm.slane %v538, %v550
        %v552 = vrot.slane %v551, 4
        %v553 = vsel %vm421, %v552, %v546
        %v554 = vrot.slane %v546, 4
        %v555 = vsel %vm421, %v551, %v554
        %v557 = vunpack.c.l.s4 1934713408
        %v558 = vunpack.c.0.s8 %v557
        %v559 = vperm.slane %v553, %v558
        %v561 = vunpack.c.l.s4 1934713408
        %v562 = vunpack.c.0.s8 %v561
        %v563 = vperm.slane %v555, %v562
        %v564 = vrot.slane %v559, 4
        %v565 = vsel %vm421, 0, %v564
        %v566 = vrot.slane %v563, 4
        %v567 = vsel %vm421, 0, %v566
        %v570 = vunpack.c.l.s4 1983009808
        %v571 = vunpack.c.0.s8 %v570
        %v572 = vperm.slane %v535, %v571
        %v575 = vunpack.c.l.s4 1983009808
        %v576 = vunpack.c.0.s8 %v575
        %v577 = vperm.slane %v541, %v576
        %v578 = vrot.slane %v577, 4
        %v579 = vsel %vm421, %v578, %v572
        %v580 = vrot.slane %v572, 4
        %v581 = vsel %vm421, %v577, %v580
        %v583 = vunpack.c.l.s4 1934713408
        %v584 = vunpack.c.0.s8 %v583
        %v585 = vperm.slane %v579, %v584
        %v587 = vunpack.c.l.s4 1934713408
        %v588 = vunpack.c.0.s8 %v587
        %v589 = vperm.slane %v581, %v588
        %v590 = vrot.slane %v585, 4
        %v591 = vsel %vm421, 0, %v590
        %v592 = vrot.slane %v589, 4
        %v593 = vsel %vm421, 0, %v592
        %v594 = vsel %vm421, %v566, %v559
        %v596 = vunpack.c.l.s4 1983009808
        %v597 = vunpack.c.0.s8 %v596
        %v598 = vperm.slane %v594, %v597
        %v599 = vrot.slane %v567, 4
        %v600 = vsel %vm421, %v599, %v565
        %v602 = vunpack.c.l.s4 1983009808
        %v603 = vunpack.c.0.s8 %v602
        %v604 = vperm.slane %v600, %v603
        %v605 = vrot.slane %v604, 4
        %v606 = vsel %vm421, %v605, %v598
        %v608 = vunpack.c.l.s4 1934713408
        %v609 = vunpack.c.0.s8 %v608
        %v610 = vperm.slane %v606, %v609
        %v611 = vrot.slane %v610, 4
        %v612 = vsel %vm421, 0, %v611
        %v613 = vsel %vm421, %v592, %v585
        %v615 = vunpack.c.l.s4 1983009808
        %v616 = vunpack.c.0.s8 %v615
        %v617 = vperm.slane %v613, %v616
        %v618 = vrot.slane %v593, 4
        %v619 = vsel %vm421, %v618, %v591
        %v621 = vunpack.c.l.s4 1983009808
        %v622 = vunpack.c.0.s8 %v621
        %v623 = vperm.slane %v619, %v622
        %v624 = vrot.slane %v623, 4
        %v625 = vsel %vm421, %v624, %v617
        %v627 = vunpack.c.l.s4 1934713408
        %v628 = vunpack.c.0.s8 %v627
        %v629 = vperm.slane %v625, %v628
        %v630 = vrot.slane %v629, 4
        %v631 = vsel %vm421, 0, %v630
        %v634 = vpack.i.b16 %v629, %v610
        %v636 = vshrl.u32 %v610, 16
        %v637 = vshrl.u32 %v629, 16
        %v638 = vpack.i.b16 %v637, %v636
        %v642 = vpack.i.b16 %v631, %v612
        %v644 = vshrl.u32 %v612, 16
        %v645 = vshrl.u32 %v631, 16
        %v646 = vpack.i.b16 %v645, %v644
        %648 = vst.msk [vmem:[%s310] sm:$0xf] %vm517, %v634
        %649 = vst.msk [vmem:[%s310 + $0x4] sm:$0xf] %vm517, %v638
        %650 = vst.msk [vmem:[%s310 + $0x8] sm:$0xf] %vm517, %v642
        %651 = vst.msk [vmem:[%s310 + $0xc] sm:$0xf] %vm517, %v646
        %s652 = sand.u32 %s146, 1
        %s653 = scalar_lea.sflag [#allocation4], %s652
        %s654 = sand.u32 %s146, 1
        %s655 = smul.addr %s654, 16
        %s656 = scalar_lea.vmem [#allocation8], %s655
        %s657 = sand.u32 %s172, 1
        %s658 = scalar_lea.sflag [#allocation10], %s657
        %s659 = sand.u32 %s172, 1
        %s660 = smul.addr %s659, 16
        %s661 = scalar_lea.vmem [#allocation9], %s660
        // Predicated region
        $region53: #{tpu_custom_call.1} parent=39 // pred_check
          %p662 = pneg %p156
        $region54: #{tpu_custom_call.1} parent=39 // pred_check_branch
          %664 = sbr.rel (%p662) target = $region56
        $region55: #{tpu_custom_call.1} parent=39 // pred_region
          %666 = vsyncadd %s653, 0
          %s667 = smul.addr %s28, 4
          %s668 = smul.addr %s667, 4
          %s669 = scalar_lea.hbm %s5, %s668
          %s670 = sshll.u32 %s656, 4
          %s671 = int_to_ptr.vmem [resolvable:$true] %s670
          %s672 = sshll.u32 %s669, 4
          %s673 = int_to_ptr.hbm [resolvable:$true] %s672
          %678 = dma.vmem_to_hbm [thread:$0]  %s671, 256, %s673, %s653, 64, 64, 4
        $region56: #{tpu_custom_call.1} parent=39 // pred_fallthru
          _
        // Predicated region
        $region57: #{tpu_custom_call.1} parent=39 // pred_check
          %p679 = pneg %p182
        $region58: #{tpu_custom_call.1} parent=39 // pred_check_branch
          %681 = sbr.rel (%p679) target = $region60
        $region59: #{tpu_custom_call.1} parent=39 // pred_region
          %683 = vsyncadd %s658, 0
          %s684 = smul.addr %s28, 4
          %s685 = smul.addr %s684, 4
          %s686 = scalar_lea.hbm %s6, %s685
          %s687 = sshll.u32 %s661, 4
          %s688 = int_to_ptr.vmem [resolvable:$true] %s687
          %s689 = sshll.u32 %s686, 4
          %s690 = int_to_ptr.hbm [resolvable:$true] %s689
          %695 = dma.vmem_to_hbm [thread:$0]  %s688, 256, %s690, %s658, 64, 64, 4
        $region60: #{tpu_custom_call.1} parent=39 // pred_fallthru
          _
      $region40: #{tpu_custom_call.1} parent=5 // pred_fallthru
        _
      %p696 = scmp.le.s32.totalorder 2, %s23
      // Predicated region
      $region61: #{tpu_custom_call.1} parent=5 // pred_check
        %p697 = pneg %p696
      $region62: #{tpu_custom_call.1} parent=5 // pred_check_branch
        %699 = sbr.rel (%p697) target = $region64
      $region63: #{tpu_custom_call.1} parent=5 // pred_region
        %s700 = ssub.s32 %s23, 2
        // Predicated region
        $region65: #{tpu_custom_call.1} parent=63 // pred_check
          %p701 = pneg %p162
        $region66: #{tpu_custom_call.1} parent=63 // pred_check_branch
          %703 = sbr.rel (%p701) target = $region68
        $region67: #{tpu_custom_call.1} parent=63 // pred_region
          %s704 = sand.u32 %s147, 1
          %s705 = scalar_lea.sflag [#allocation4], %s704
          %s706 = sand.u32 %s147, 1
          %s707 = smul.addr %s706, 16
          %s708 = scalar_lea.vmem [#allocation8], %s707
          %710 = dma.done %s705, 256
        $region68: #{tpu_custom_call.1} parent=63 // pred_fallthru
          _
        // Predicated region
        $region69: #{tpu_custom_call.1} parent=63 // pred_check
          %p711 = pneg %p188
        $region70: #{tpu_custom_call.1} parent=63 // pred_check_branch
          %713 = sbr.rel (%p711) target = $region72
        $region71: #{tpu_custom_call.1} parent=63 // pred_region
          %s714 = sand.u32 %s173, 1
          %s715 = scalar_lea.sflag [#allocation10], %s714
          %s716 = sand.u32 %s173, 1
          %s717 = smul.addr %s716, 16
          %s718 = scalar_lea.vmem [#allocation9], %s717
          %720 = dma.done %s715, 256
        $region72: #{tpu_custom_call.1} parent=63 // pred_fallthru
          _
      $region64: #{tpu_custom_call.1} parent=5 // pred_fallthru
        _
    $region6: #{tpu_custom_call.1} parent=1 // loop_footer
      %s27 = sadd.s32 1, %s23
    $region7: #{tpu_custom_call.1} parent=1 // loop_footer_branch
      %22 = sbr.rel target = $region3
    $region8: #{tpu_custom_call.1} parent=1 // loop_exit
      _
    %721 = vsyncpa [#allocation3], 1
    %s722 = scalar_lea.sflag [#allocation3], 1
    %723 = vsyncpa %s722, 1
    %724 = vsyncpa [#allocation6], 1
    %725 = vsyncpa [#allocation4], 1
    %s726 = scalar_lea.sflag [#allocation4], 1
    %727 = vsyncpa %s726, 1
    %728 = vsyncpa [#allocation10], 1
    %s729 = scalar_lea.sflag [#allocation10], 1
    %730 = vsyncpa %s729, 1

// kernel: tpu_custom_call.1
$region0: #{tpu_custom_call.1}
  #allocation0 [shape = 'u32[]', space=smem, size = 0x4, offset = 0x4, fixed_abs, tag = 'smem constant byte address 0x4 - core index']
  #allocation1 [shape = 'u32[72,128]{1,0:T(1,128)}', space=vmem, size = 0x9000, scoped, tag = 'internal scratch']
  %s0 = inlined_call_operand.hbm [shape: f32[2,8,32], index: 0, kind: input, shape index: {}]
  %s1 = inlined_call_operand.hbm [shape: f32[1,32], index: 1, kind: input, shape index: {}]
  %s2 = inlined_call_operand.vmem [shape: f32[1,32], index: 2, kind: input, shape index: {}]
  %s3 = inlined_call_operand.hbm [shape: bf16[32,64], index: 3, kind: input, shape index: {}]
  %s4 = inlined_call_operand.vmem [shape: f32[1,64], index: 4, kind: input, shape index: {}]
  %s5 = inlined_call_operand.hbm [shape: bf16[2,4,8,8], index: 5, kind: output, shape index: {0}]
  %s6 = inlined_call_operand.hbm [shape: bf16[2,4,8,8], index: 6, kind: output, shape index: {1}]
  %7 = xla_tuple %s5, %s6
  %s8 = sld [smem:[#allocation0]]
  $region73: #{tpu_custom_call.1} parent=0
    _
  %s10 = ssub.s32 1, %s8
  %s11 = scalar_select 0, %s10, %s8
  $region1: #{tpu_custom_call.1} parent=0
    #allocation2 [shape = 'u8[8192]{0}', space=vmem, size = 0x2000, scoped, tag = 'input window, operand 0']
    #allocation3 [shape = 's32[2]{0}', space=sflag, size = 0x8, scoped, tag = 'scoped memory for tpu_custom_call.1']
    #allocation4 [shape = 's32[2]{0}', space=sflag, size = 0x8, scoped, tag = 'scoped memory for tpu_custom_call.1']
    #allocation5 [shape = 'u8[512]{0}', space=vmem, size = 0x400, scoped, tag = 'input window, operand 1, single buffered']
    #allocation6 [shape = 's32[1]{0}', space=sflag, size = 0x4, scoped, tag = 'scoped memory for tpu_custom_call.1']
    #allocation7 [shape = 'u8[8192]{0}', space=vmem, size = 0x2000, scoped, tag = 'input window, operand 3, single buffered']
    #allocation8 [shape = 'u8[16384]{0}', space=vmem, size = 0x4000, scoped, tag = 'output window, operand 0']
    #allocation9 [shape = 'u8[16384]{0}', space=vmem, size = 0x4000, scoped, tag = 'output window, operand 1']
    #allocation10 [shape = 's32[2]{0}', space=sflag, size = 0x8, scoped, tag = 'scoped memory for tpu_custom_call.1']
    %12 = vsyncpa [#allocation3], 0
    %s13 = scalar_lea.sflag [#allocation3], 1
    %14 = vsyncpa %s13, 0
    %15 = vsyncpa [#allocation6], 0
    %16 = vsyncpa [#allocation4], 0
    %s17 = scalar_lea.sflag [#allocation4], 1
    %18 = vsyncpa %s17, 0
    %19 = vsyncpa [#allocation10], 0
    %s20 = scalar_lea.sflag [#allocation10], 1
    %21 = vsyncpa %s20, 0
    loop: start=0, step=1, limit=4
    $region2: #{tpu_custom_call.1} parent=1 // loop_pre_header
      _
    $region3: #{tpu_custom_call.1} parent=1 // loop_header
      %s23 = sphi 0, %s27
      %p24 = scmp.ge.s32.totalorder %s23, 4
      %s33 = sphi 0, %s35
      %s36 = sphi 0, %s33
      %s37 = sphi 0, %s36
      %s53 = sphi 0, %s37
      %s57 = sphi 0, %s57
      %s59 = sphi 0, %s57
      %s60 = sphi 0, %s59
      %s74 = sphi 0, %s60
      %s78 = sphi 0, %s78
      %s80 = sphi 0, %s78
      %s81 = sphi 0, %s80
      %s95 = sphi 0, %s81
      %s99 = sphi 0, %s99
      %s101 = sphi 0, %s99
      %s102 = sphi 0, %s101
      %s116 = sphi 0, %s102
      %s120 = sphi 0, %s120
      %s122 = sphi 0, %s120
      %s123 = sphi 0, %s122
      %s137 = sphi 0, %s123
      %s143 = sphi 0, %s145
      %s146 = sphi 0, %s143
      %s147 = sphi 0, %s146
      %s163 = sphi 0, %s147
      %s169 = sphi 0, %s171
      %s172 = sphi 0, %s169
      %s173 = sphi 0, %s172
      %s189 = sphi 0, %s173
    $region4: #{tpu_custom_call.1} parent=1 // loop_header_branch
      %26 = sbr.rel (%p24) target = $region8
    $region5: #{tpu_custom_call.1} parent=1 // loop_body
      %s28 = ssub.s32 %s23, 1
      %s29 = ssub.s32 %s23, 2
      %s30 = sadd.s32 %s23, 1
      %s31 = ssub.s32 %s23, %s30
      %p32 = scmp.eq.s32.totalorder %s31, 0
      %s34 = sadd.s32 %s33, 1
      %s35 = scalar_select %p32, %s33, %s34
      %p38 = pneg %p32
      %p39 = scmp.eq.s32.totalorder %s23, 1
      %p40 = por %p38, %p39
      %p41 = scmp.ne.s32.totalorder %s33, %s36
      %p42 = scmp.eq.s32.totalorder %s23, 0
      %p43 = por %p41, %p42
      %p44 = scmp.ne.s32.totalorder %s33, %s36
      %p45 = scmp.eq.s32.totalorder %s28, 1
      %p46 = por %p44, %p45
      %p47 = scmp.ne.s32.totalorder %s36, %s37
      %p48 = scmp.eq.s32.totalorder %s28, 0
      %p49 = por %p47, %p48
      %p50 = scmp.ne.s32.totalorder %s36, %s37
      %p51 = scmp.eq.s32.totalorder %s29, 1
      %p52 = por %p50, %p51
      %p54 = scmp.ne.s32.totalorder %s37, %s53
      %p55 = scmp.eq.s32.totalorder %s29, 0
      %p56 = por %p54, %p55
      %s58 = sadd.s32 %s57, 1
      %p61 = scmp.eq.s32.totalorder %s23, 1
      %p62 = scmp.ne.s32.totalorder %s57, %s59
      %p63 = scmp.eq.s32.totalorder %s23, 0
      %p64 = por %p62, %p63
      %p65 = scmp.ne.s32.totalorder %s57, %s59
      %p66 = scmp.eq.s32.totalorder %s28, 1
      %p67 = por %p65, %p66
      %p68 = scmp.ne.s32.totalorder %s59, %s60
      %p69 = scmp.eq.s32.totalorder %s28, 0
      %p70 = por %p68, %p69
      %p71 = scmp.ne.s32.totalorder %s59, %s60
      %p72 = scmp.eq.s32.totalorder %s29, 1
      %p73 = por %p71, %p72
      %p75 = scmp.ne.s32.totalorder %s60, %s74
      %p76 = scmp.eq.s32.totalorder %s29, 0
      %p77 = por %p75, %p76
      %s79 = sadd.s32 %s78, 1
      %p82 = scmp.eq.s32.totalorder %s23, 1
      %p83 = scmp.ne.s32.totalorder %s78, %s80
      %p84 = scmp.eq.s32.totalorder %s23, 0
      %p85 = por %p83, %p84
      %p86 = scmp.ne.s32.totalorder %s78, %s80
      %p87 = scmp.eq.s32.totalorder %s28, 1
      %p88 = por %p86, %p87
      %p89 = scmp.ne.s32.totalorder %s80, %s81
      %p90 = scmp.eq.s32.totalorder %s28, 0
      %p91 = por %p89, %p90
      %p92 = scmp.ne.s32.totalorder %s80, %s81
      %p93 = scmp.eq.s32.totalorder %s29, 1
      %p94 = por %p92, %p93
      %p96 = scmp.ne.s32.totalorder %s81, %s95
      %p97 = scmp.eq.s32.totalorder %s29, 0
      %p98 = por %p96, %p97
      %s100 = sadd.s32 %s99, 1
      %p103 = scmp.eq.s32.totalorder %s23, 1
      %p104 = scmp.ne.s32.totalorder %s99, %s101
      %p105 = scmp.eq.s32.totalorder %s23, 0
      %p106 = por %p104, %p105
      %p107 = scmp.ne.s32.totalorder %s99, %s101
      %p108 = scmp.eq.s32.totalorder %s28, 1
      %p109 = por %p107, %p108
      %p110 = scmp.ne.s32.totalorder %s101, %s102
      %p111 = scmp.eq.s32.totalorder %s28, 0
      %p112 = por %p110, %p111
      %p113 = scmp.ne.s32.totalorder %s101, %s102
      %p114 = scmp.eq.s32.totalorder %s29, 1
      %p115 = por %p113, %p114
      %p117 = scmp.ne.s32.totalorder %s102, %s116
      %p118 = scmp.eq.s32.totalorder %s29, 0
      %p119 = por %p117, %p118
      %s121 = sadd.s32 %s120, 1
      %p124 = scmp.eq.s32.totalorder %s23, 1
      %p125 = scmp.ne.s32.totalorder %s120, %s122
      %p126 = scmp.eq.s32.totalorder %s23, 0
      %p127 = por %p125, %p126
      %p128 = scmp.ne.s32.totalorder %s120, %s122
      %p129 = scmp.eq.s32.totalorder %s28, 1
      %p130 = por %p128, %p129
      %p131 = scmp.ne.s32.totalorder %s122, %s123
      %p132 = scmp.eq.s32.totalorder %s28, 0
      %p133 = por %p131, %p132
      %p134 = scmp.ne.s32.totalorder %s122, %s123
      %p135 = scmp.eq.s32.totalorder %s29, 1
      %p136 = por %p134, %p135
      %p138 = scmp.ne.s32.totalorder %s123, %s137
      %p139 = scmp.eq.s32.totalorder %s29, 0
      %p140 = por %p138, %p139
      %s141 = ssub.s32 %s23, %s30
      %p142 = scmp.eq.s32.totalorder %s141, 0
      %s144 = sadd.s32 %s143, 1
      %s145 = scalar_select %p142, %s143, %s144
      %p148 = pneg %p142
      %p149 = scmp.eq.s32.totalorder %s23, 1
      %p150 = por %p148, %p149
      %p151 = scmp.ne.s32.totalorder %s143, %s146
      %p152 = scmp.eq.s32.totalorder %s23, 0
      %p153 = por %p151, %p152
      %p154 = scmp.ne.s32.totalorder %s143, %s146
      %p155 = scmp.eq.s32.totalorder %s28, 1
      %p156 = por %p154, %p155
      %p157 = scmp.ne.s32.totalorder %s146, %s147
      %p158 = scmp.eq.s32.totalorder %s28, 0
      %p159 = por %p157, %p158
      %p160 = scmp.ne.s32.totalorder %s146, %s147
      %p161 = scmp.eq.s32.totalorder %s29, 1
      %p162 = por %p160, %p161
      %p164 = scmp.ne.s32.totalorder %s147, %s163
      %p165 = scmp.eq.s32.totalorder %s29, 0
      %p166 = por %p164, %p165
      %s167 = ssub.s32 %s23, %s30
      %p168 = scmp.eq.s32.totalorder %s167, 0
      %s170 = sadd.s32 %s169, 1
      %s171 = scalar_select %p168, %s169, %s170
      %p174 = pneg %p168
      %p175 = scmp.eq.s32.totalorder %s23, 1
      %p176 = por %p174, %p175
      %p177 = scmp.ne.s32.totalorder %s169, %s172
      %p178 = scmp.eq.s32.totalorder %s23, 0
      %p179 = por %p177, %p178
      %p180 = scmp.ne.s32.totalorder %s169, %s172
      %p181 = scmp.eq.s32.totalorder %s28, 1
      %p182 = por %p180, %p181
      %p183 = scmp.ne.s32.totalorder %s172, %s173
      %p184 = scmp.eq.s32.totalorder %s28, 0
      %p185 = por %p183, %p184
      %p186 = scmp.ne.s32.totalorder %s172, %s173
      %p187 = scmp.eq.s32.totalorder %s29, 1
      %p188 = por %p186, %p187
      %p190 = scmp.ne.s32.totalorder %s173, %s189
      %p191 = scmp.eq.s32.totalorder %s29, 0
      %p192 = por %p190, %p191
      %p193 = scmp.le.s32.totalorder 1, %s23
      %p194 = scmp.lt.s32.totalorder %s23, 3
      %p195 = pnand %p193, %p194
      %p196 = pneg %p195
      // Predicated region
      $region9: #{tpu_custom_call.1} parent=5 // pred_check
        _
      $region10: #{tpu_custom_call.1} parent=5 // pred_check_branch
        %198 = sbr.rel (%p195) target = $region12
      $region11: #{tpu_custom_call.1} parent=5 // pred_region
        %s199 = ssub.s32 %s23, 1
        // Predicated region
        $region13: #{tpu_custom_call.1} parent=11 // pred_check
          %p200 = pneg %p70
        $region14: #{tpu_custom_call.1} parent=11 // pred_check_branch
          %202 = sbr.rel (%p200) target = $region16
        $region15: #{tpu_custom_call.1} parent=11 // pred_region
          %204 = vsyncadd [#allocation6], 0
          %s206 = sshll.u32 %s1, 4
          %s207 = int_to_ptr.hbm [resolvable:$true] %s206
          %s208 = sshll.u32 [#allocation5], 4
          %s209 = int_to_ptr.vmem [resolvable:$true] %s208
          %211 = dma.hbm_to_vmem [thread:$0]  %s207, 16, %s209, [#allocation6]
        $region16: #{tpu_custom_call.1} parent=11 // pred_fallthru
          _
        // Predicated region
        $region17: #{tpu_custom_call.1} parent=11 // pred_check
          %p212 = pneg %p91
        $region18: #{tpu_custom_call.1} parent=11 // pred_check_branch
          %214 = sbr.rel (%p212) target = $region20
        $region19: #{tpu_custom_call.1} parent=11 // pred_region
          _
        $region20: #{tpu_custom_call.1} parent=11 // pred_fallthru
          _
        // Predicated region
        $region21: #{tpu_custom_call.1} parent=11 // pred_check
          %p215 = pneg %p112
        $region22: #{tpu_custom_call.1} parent=11 // pred_check_branch
          %217 = sbr.rel (%p215) target = $region24
        $region23: #{tpu_custom_call.1} parent=11 // pred_region
          %219 = vsyncadd [#allocation6], 0
          %s220 = sshll.u32 %s3, 4
          %s221 = int_to_ptr.hbm [resolvable:$true] %s220
          %s222 = sshll.u32 [#allocation7], 4
          %s223 = int_to_ptr.vmem [resolvable:$true] %s222
          %228 = dma.hbm_to_vmem [thread:$0]  %s221, 256, %s223, [#allocation6], 64, 64, 4
        $region24: #{tpu_custom_call.1} parent=11 // pred_fallthru
          _
        // Predicated region
        $region25: #{tpu_custom_call.1} parent=11 // pred_check
          %p229 = pneg %p133
        $region26: #{tpu_custom_call.1} parent=11 // pred_check_branch
          %231 = sbr.rel (%p229) target = $region28
        $region27: #{tpu_custom_call.1} parent=11 // pred_region
          _
        $region28: #{tpu_custom_call.1} parent=11 // pred_fallthru
          _
      $region12: #{tpu_custom_call.1} parent=5 // pred_fallthru
        _
      %p232 = scmp.lt.s32.totalorder %s23, 2
      // Predicated region
      $region29: #{tpu_custom_call.1} parent=5 // pred_check
        %p233 = pneg %p232
      $region30: #{tpu_custom_call.1} parent=5 // pred_check_branch
        %235 = sbr.rel (%p233) target = $region32
      $region31: #{tpu_custom_call.1} parent=5 // pred_region
        // Predicated region
        $region33: #{tpu_custom_call.1} parent=31 // pred_check
          %p236 = pneg %p43
        $region34: #{tpu_custom_call.1} parent=31 // pred_check_branch
          %238 = sbr.rel (%p236) target = $region36
        $region35: #{tpu_custom_call.1} parent=31 // pred_region
          %s239 = sand.u32 %s33, 1
          %s240 = scalar_lea.sflag [#allocation3], %s239
          %s241 = sand.u32 %s33, 1
          %s242 = smul.addr %s241, 8
          %s243 = scalar_lea.vmem [#allocation2], %s242
          %245 = vsyncadd %s240, 0
          %s246 = smul.addr %s23, 8
          %s247 = scalar_lea.hbm %s0, %s246
          %s249 = sshll.u32 %s247, 4
          %s250 = int_to_ptr.hbm [resolvable:$true] %s249
          %s251 = sshll.u32 %s243, 4
          %s252 = int_to_ptr.vmem [resolvable:$true] %s251
          %254 = dma.hbm_to_vmem [thread:$0]  %s250, 128, %s252, %s240
        $region36: #{tpu_custom_call.1} parent=31 // pred_fallthru
          _
      $region32: #{tpu_custom_call.1} parent=5 // pred_fallthru
        _
      %p255 = scmp.le.s32.totalorder 1, %s23
      %p256 = scmp.lt.s32.totalorder %s23, 3
      %p257 = pnand %p255, %p256
      %p258 = pneg %p257
      // Predicated region
      $region37: #{tpu_custom_call.1} parent=5 // pred_check
        _
      $region38: #{tpu_custom_call.1} parent=5 // pred_check_branch
        %260 = sbr.rel (%p257) target = $region40
      $region39: #{tpu_custom_call.1} parent=5 // pred_region
        %s261 = ssub.s32 %s23, 1
        %s262 = sand.u32 %s36, 1
        %s263 = scalar_lea.sflag [#allocation3], %s262
        %s264 = sand.u32 %s36, 1
        %s265 = smul.addr %s264, 8
        %s266 = scalar_lea.vmem [#allocation2], %s265
        // Predicated region
        $region41: #{tpu_custom_call.1} parent=39 // pred_check
          %p267 = pneg %p49
        $region42: #{tpu_custom_call.1} parent=39 // pred_check_branch
          %269 = sbr.rel (%p267) target = $region44
        $region43: #{tpu_custom_call.1} parent=39 // pred_region
          %271 = dma.done %s263, 128
        $region44: #{tpu_custom_call.1} parent=39 // pred_fallthru
          _
        // Predicated region
        $region45: #{tpu_custom_call.1} parent=39 // pred_check
          %p272 = pneg %p70
        $region46: #{tpu_custom_call.1} parent=39 // pred_check_branch
          %274 = sbr.rel (%p272) target = $region48
        $region47: #{tpu_custom_call.1} parent=39 // pred_region
          %276 = dma.done [#allocation6], 16
        $region48: #{tpu_custom_call.1} parent=39 // pred_fallthru
          _
        // Predicated region
        $region49: #{tpu_custom_call.1} parent=39 // pred_check
          %p277 = pneg %p112
        $region50: #{tpu_custom_call.1} parent=39 // pred_check_branch
          %279 = sbr.rel (%p277) target = $region52
        $region51: #{tpu_custom_call.1} parent=39 // pred_region
          %281 = dma.done [#allocation6], 256
        $region52: #{tpu_custom_call.1} parent=39 // pred_fallthru
          _
        %s282 = sand.u32 %s36, 1
        %s283 = scalar_lea.sflag [#allocation3], %s282
        %s284 = sand.u32 %s36, 1
        %s285 = smul.addr %s284, 8
        %s286 = scalar_lea.vmem [#allocation2], %s285
        %p287 = pneg %p49
        %p288 = pneg %p46
        %p289 = pneg %p70
        %p290 = pneg %p67
        %p291 = pneg %p91
        %p292 = pneg %p88
        %p293 = pneg %p112
        %p294 = pneg %p109
        %p295 = pneg %p133
        %p296 = pneg %p130
        %p297 = pneg %p159
        %p298 = pneg %p156
        %s299 = sand.u32 %s146, 1
        %s300 = scalar_lea.sflag [#allocation4], %s299
        %s301 = sand.u32 %s146, 1
        %s302 = smul.addr %s301, 16
        %s303 = scalar_lea.vmem [#allocation8], %s302
        %p304 = pneg %p185
        %p305 = pneg %p182
        %s306 = sand.u32 %s172, 1
        %s307 = scalar_lea.sflag [#allocation10], %s306
        %s308 = sand.u32 %s172, 1
        %s309 = smul.addr %s308, 16
        %s310 = scalar_lea.vmem [#allocation9], %s309
        %v312 = vld [vmem:[%s266] sm:$0xff]
        %v313 = vld [vmem:[#allocation5] sm:$0x1]
        %v314 = vld [vmem:[%s2] sm:$0x1]
        %vm315 = vcmask 261120
        %v316 = vsel %vm315, %v312, 0.0
        %317 = vadd.xlane.f32.xlu0 %v316
        %v318 = vpop.xlane.xlu0 %317
        %v319 = vrcp.pop 32.0
        %v320 = vmul.f32 32.0, %v319
        %v321 = vsub.f32 1.0, %v320
        %v322 = vmul.f32 %v319, %v321
        %v323 = vadd.f32 %v319, %v322
        %vm324 = vweird.f32 %v319
        %v325 = vsel %vm324, %v319, %v323
        %v326 = vmul.f32 %v318, %v325
        %v327 = vsub.f32 %v312, %v326
        %v328 = vmul.f32 %v327, %v327
        %v329 = vsel %vm315, %v328, 0.0
        %330 = vadd.xlane.f32.xlu0 %v329
        %v331 = vpop.xlane.xlu0 %330
        %v332 = vmul.f32 %v331, %v325
        %v333 = vadd.f32 %v332, 1e-05
        %v334 = vrsqrt.pop %v333
        %v335 = vmul.f32 %v334, %v333
        %v336 = vmul.f32 %v335, %v334
        %v337 = vmul.f32 0.5, %v336
        %v338 = vsub.f32 1.5, %v337
        %v339 = vmul.f32 %v334, %v338
        %vm340 = vweird.f32 %v333
        %vm341 = vweird.f32 %v334
        %vm342 = vmor %vm340, %vm341
        %v343 = vsel %vm342, %v334, %v339
        %v344 = vmul.f32 %v327, %v343
        %v346 = vperm.slane %v313, 0
        %v348 = vmul.f32 %v344, %v346
        %v350 = vperm.slane %v314, 0
        %v352 = vadd.f32 %v348, %v350
        %v353 = vpack.c.bf16 %v352, %v352
        %v354 = vld [vmem:[#allocation7] sm:$0xf]
        %v355 = vld [vmem:[#allocation7 + $0x4] sm:$0xf]
        %v356 = vld [vmem:[#allocation7 + $0x8] sm:$0xf]
        %v357 = vld [vmem:[#allocation7 + $0xc] sm:$0xf]
        %v358 = vld [vmem:[%s4] sm:$0x1]
        %v360 = vperm.slane %v358, 0
        %v366 = vunpack.c.l.b16 %v354
        %v367 = vunpack.c.l.b16 %v355
        %v368 = vunpack.c.l.b16 %v356
        %v369 = vunpack.c.l.b16 %v357
        %v370 = vpack.c.b16 %v367, %v366
        %v371 = vpack.c.b16 %v369, %v368
        %v375 = vsel %vm315, %v353, 0
        %377 = vmatpush.bf16.msra.mxu0 0
        %378 = vmatpush.bf16.msra.mxu0 0
        %379 = vmatpush.bf16.msra.mxu0 0
        %380 = vmatpush.bf16.msra.mxu0 0
        %381 = vmatpush.bf16.msra.mxu0 0
        %382 = vmatpush.bf16.msra.mxu0 0
        %383 = vmatpush.bf16.msra.mxu0 %v371
        %384 = vmatpush.bf16.msra.mxu0 %v370
        %385 = vmatmul.bf16.gmra.mxu0 %v375
        %v386 = vpop.f32.mrf.mxu0
        %v387 = vadd.f32 %v360, %v386
        %v388 = vpop.f32.mrf.mxu0
        %389 = vdwg.mxu0
        %v390 = vpack.c.bf16 %v387, %v387
        %392 = vrot.lane.b32.xlu0 %v390, 120
        %v393 = vpop.permute.xlu0 %392
        %394 = vrot.lane.b32.xlu0 %v390, 112
        %v395 = vpop.permute.xlu0 %394
        %396 = vrot.lane.b32.xlu0 %v390, 104
        %v397 = vpop.permute.xlu0 %396
        %v400 = vpack.i.b16 %v393, %v390
        %v401 = vshrl.u32 %v390, 16
        %v402 = vshrl.u32 %v393, 16
        %v403 = vpack.i.b16 %v402, %v401
        %v406 = vpack.i.b16 %v397, %v395
        %v407 = vshrl.u32 %v395, 16
        %v408 = vshrl.u32 %v397, 16
        %v409 = vpack.i.b16 %v408, %v407
        %v412 = vunpack.c.l.s4 1983009808
        %v413 = vunpack.c.0.s8 %v412
        %v414 = vperm.slane %v400, %v413
        %v417 = vunpack.c.l.s4 1983009808
        %v418 = vunpack.c.0.s8 %v417
        %v419 = vperm.slane %v406, %v418
        %v420 = vrot.slane %v419, 4
        %vm421 = vcmask 1047556
        %v422 = vsel %vm421, %v420, %v414
        %v423 = vrot.slane %v414, 4
        %v424 = vsel %vm421, %v419, %v423
        %v426 = vunpack.c.l.s4 1934713408
        %v427 = vunpack.c.0.s8 %v426
        %v428 = vperm.slane %v422, %v427
        %v430 = vunpack.c.l.s4 1934713408
        %v431 = vunpack.c.0.s8 %v430
        %v432 = vperm.slane %v424, %v431
        %v433 = vrot.slane %v428, 4
        %v434 = vsel %vm421, 0, %v433
        %v435 = vrot.slane %v432, 4
        %v436 = vsel %vm421, 0, %v435
        %v439 = vunpack.c.l.s4 1983009808
        %v440 = vunpack.c.0.s8 %v439
        %v441 = vperm.slane %v403, %v440
        %v444 = vunpack.c.l.s4 1983009808
        %v445 = vunpack.c.0.s8 %v444
        %v446 = vperm.slane %v409, %v445
        %v447 = vrot.slane %v446, 4
        %v448 = vsel %vm421, %v447, %v441
        %v449 = vrot.slane %v441, 4
        %v450 = vsel %vm421, %v446, %v449
        %v452 = vunpack.c.l.s4 1934713408
        %v453 = vunpack.c.0.s8 %v452
        %v454 = vperm.slane %v448, %v453
        %v456 = vunpack.c.l.s4 1934713408
        %v457 = vunpack.c.0.s8 %v456
        %v458 = vperm.slane %v450, %v457
        %v459 = vrot.slane %v454, 4
        %v460 = vsel %vm421, 0, %v459
        %v461 = vrot.slane %v458, 4
        %v462 = vsel %vm421, 0, %v461
        %v463 = vsel %vm421, %v435, %v428
        %v465 = vunpack.c.l.s4 1983009808
        %v466 = vunpack.c.0.s8 %v465
        %v467 = vperm.slane %v463, %v466
        %v468 = vrot.slane %v436, 4
        %v469 = vsel %vm421, %v468, %v434
        %v471 = vunpack.c.l.s4 1983009808
        %v472 = vunpack.c.0.s8 %v471
        %v473 = vperm.slane %v469, %v472
        %v474 = vrot.slane %v473, 4
        %v475 = vsel %vm421, %v474, %v467
        %v477 = vunpack.c.l.s4 1934713408
        %v478 = vunpack.c.0.s8 %v477
        %v479 = vperm.slane %v475, %v478
        %v480 = vrot.slane %v479, 4
        %v481 = vsel %vm421, 0, %v480
        %v482 = vsel %vm421, %v461, %v454
        %v484 = vunpack.c.l.s4 1983009808
        %v485 = vunpack.c.0.s8 %v484
        %v486 = vperm.slane %v482, %v485
        %v487 = vrot.slane %v462, 4
        %v488 = vsel %vm421, %v487, %v460
        %v490 = vunpack.c.l.s4 1983009808
        %v491 = vunpack.c.0.s8 %v490
        %v492 = vperm.slane %v488, %v491
        %v493 = vrot.slane %v492, 4
        %v494 = vsel %vm421, %v493, %v486
        %v496 = vunpack.c.l.s4 1934713408
        %v497 = vunpack.c.0.s8 %v496
        %v498 = vperm.slane %v494, %v497
        %v499 = vrot.slane %v498, 4
        %v500 = vsel %vm421, 0, %v499
        %v503 = vpack.i.b16 %v498, %v479
        %v505 = vshrl.u32 %v479, 16
        %v506 = vshrl.u32 %v498, 16
        %v507 = vpack.i.b16 %v506, %v505
        %v511 = vpack.i.b16 %v500, %v481
        %v513 = vshrl.u32 %v481, 16
        %v514 = vshrl.u32 %v500, 16
        %v515 = vpack.i.b16 %v514, %v513
        %vm517 = vcmask 60416
        %518 = vst.msk [vmem:[%s303] sm:$0xf] %vm517, %v503
        %519 = vst.msk [vmem:[%s303 + $0x4] sm:$0xf] %vm517, %v507
        %520 = vst.msk [vmem:[%s303 + $0x8] sm:$0xf] %vm517, %v511
        %521 = vst.msk [vmem:[%s303 + $0xc] sm:$0xf] %vm517, %v515
        %522 = vrot.lane.b32.xlu0 %v390, 96
        %v523 = vpop.permute.xlu0 %522
        %524 = vrot.lane.b32.xlu0 %v393, 96
        %v525 = vpop.permute.xlu0 %524
        %526 = vrot.lane.b32.xlu0 %v395, 96
        %v527 = vpop.permute.xlu0 %526
        %528 = vrot.lane.b32.xlu0 %v397, 96
        %v529 = vpop.permute.xlu0 %528
        %v532 = vpack.i.b16 %v525, %v523
        %v533 = vshrl.u32 %v523, 16
        %v534 = vshrl.u32 %v525, 16
        %v535 = vpack.i.b16 %v534, %v533
        %v538 = vpack.i.b16 %v529, %v527
        %v539 = vshrl.u32 %v527, 16
        %v540 = vshrl.u32 %v529, 16
        %v541 = vpack.i.b16 %v540, %v539
        %v544 = vunpack.c.l.s4 1983009808
        %v545 = vunpack.c.0.s8 %v544
        %v546 = vperm.slane %v532, %v545
        %v549 = vunpack.c.l.s4 1983009808
        %v550 = vunpack.c.0.s8 %v549
        %v551 = vperm.slane %v538, %v550
        %v552 = vrot.slane %v551, 4
        %v553 = vsel %vm421, %v552, %v546
        %v554 = vrot.slane %v546, 4
        %v555 = vsel %vm421, %v551, %v554
        %v557 = vunpack.c.l.s4 1934713408
        %v558 = vunpack.c.0.s8 %v557
        %v559 = vperm.slane %v553, %v558
        %v561 = vunpack.c.l.s4 1934713408
        %v562 = vunpack.c.0.s8 %v561
        %v563 = vperm.slane %v555, %v562
        %v564 = vrot.slane %v559, 4
        %v565 = vsel %vm421, 0, %v564
        %v566 = vrot.slane %v563, 4
        %v567 = vsel %vm421, 0, %v566
        %v570 = vunpack.c.l.s4 1983009808
        %v571 = vunpack.c.0.s8 %v570
        %v572 = vperm.slane %v535, %v571
        %v575 = vunpack.c.l.s4 1983009808
        %v576 = vunpack.c.0.s8 %v575
        %v577 = vperm.slane %v541, %v576
        %v578 = vrot.slane %v577, 4
        %v579 = vsel %vm421, %v578, %v572
        %v580 = vrot.slane %v572, 4
        %v581 = vsel %vm421, %v577, %v580
        %v583 = vunpack.c.l.s4 1934713408
        %v584 = vunpack.c.0.s8 %v583
        %v585 = vperm.slane %v579, %v584
        %v587 = vunpack.c.l.s4 1934713408
        %v588 = vunpack.c.0.s8 %v587
        %v589 = vperm.slane %v581, %v588
        %v590 = vrot.slane %v585, 4
        %v591 = vsel %vm421, 0, %v590
        %v592 = vrot.slane %v589, 4
        %v593 = vsel %vm421, 0, %v592
        %v594 = vsel %vm421, %v566, %v559
        %v596 = vunpack.c.l.s4 1983009808
        %v597 = vunpack.c.0.s8 %v596
        %v598 = vperm.slane %v594, %v597
        %v599 = vrot.slane %v567, 4
        %v600 = vsel %vm421, %v599, %v565
        %v602 = vunpack.c.l.s4 1983009808
        %v603 = vunpack.c.0.s8 %v602
        %v604 = vperm.slane %v600, %v603
        %v605 = vrot.slane %v604, 4
        %v606 = vsel %vm421, %v605, %v598
        %v608 = vunpack.c.l.s4 1934713408
        %v609 = vunpack.c.0.s8 %v608
        %v610 = vperm.slane %v606, %v609
        %v611 = vrot.slane %v610, 4
        %v612 = vsel %vm421, 0, %v611
        %v613 = vsel %vm421, %v592, %v585
        %v615 = vunpack.c.l.s4 1983009808
        %v616 = vunpack.c.0.s8 %v615
        %v617 = vperm.slane %v613, %v616
        %v618 = vrot.slane %v593, 4
        %v619 = vsel %vm421, %v618, %v591
        %v621 = vunpack.c.l.s4 1983009808
        %v622 = vunpack.c.0.s8 %v621
        %v623 = vperm.slane %v619, %v622
        %v624 = vrot.slane %v623, 4
        %v625 = vsel %vm421, %v624, %v617
        %v627 = vunpack.c.l.s4 1934713408
        %v628 = vunpack.c.0.s8 %v627
        %v629 = vperm.slane %v625, %v628
        %v630 = vrot.slane %v629, 4
        %v631 = vsel %vm421, 0, %v630
        %v634 = vpack.i.b16 %v629, %v610
        %v636 = vshrl.u32 %v610, 16
        %v637 = vshrl.u32 %v629, 16
        %v638 = vpack.i.b16 %v637, %v636
        %v642 = vpack.i.b16 %v631, %v612
        %v644 = vshrl.u32 %v612, 16
        %v645 = vshrl.u32 %v631, 16
        %v646 = vpack.i.b16 %v645, %v644
        %648 = vst.msk [vmem:[%s310] sm:$0xf] %vm517, %v634
        %649 = vst.msk [vmem:[%s310 + $0x4] sm:$0xf] %vm517, %v638
        %650 = vst.msk [vmem:[%s310 + $0x8] sm:$0xf] %vm517, %v642
        %651 = vst.msk [vmem:[%s310 + $0xc] sm:$0xf] %vm517, %v646
        %s652 = sand.u32 %s146, 1
        %s653 = scalar_lea.sflag [#allocation4], %s652
        %s654 = sand.u32 %s146, 1
        %s655 = smul.addr %s654, 16
        %s656 = scalar_lea.vmem [#allocation8], %s655
        %s657 = sand.u32 %s172, 1
        %s658 = scalar_lea.sflag [#allocation10], %s657
        %s659 = sand.u32 %s172, 1
        %s660 = smul.addr %s659, 16
        %s661 = scalar_lea.vmem [#allocation9], %s660
        // Predicated region
        $region53: #{tpu_custom_call.1} parent=39 // pred_check
          %p662 = pneg %p156
        $region54: #{tpu_custom_call.1} parent=39 // pred_check_branch
          %664 = sbr.rel (%p662) target = $region56
        $region55: #{tpu_custom_call.1} parent=39 // pred_region
          %666 = vsyncadd %s653, 0
          %s667 = smul.addr %s28, 4
          %s668 = smul.addr %s667, 4
          %s669 = scalar_lea.hbm %s5, %s668
          %s670 = sshll.u32 %s656, 4
          %s671 = int_to_ptr.vmem [resolvable:$true] %s670
          %s672 = sshll.u32 %s669, 4
          %s673 = int_to_ptr.hbm [resolvable:$true] %s672
          %678 = dma.vmem_to_hbm [thread:$0]  %s671, 256, %s673, %s653, 64, 64, 4
        $region56: #{tpu_custom_call.1} parent=39 // pred_fallthru
          _
        // Predicated region
        $region57: #{tpu_custom_call.1} parent=39 // pred_check
          %p679 = pneg %p182
        $region58: #{tpu_custom_call.1} parent=39 // pred_check_branch
          %681 = sbr.rel (%p679) target = $region60
        $region59: #{tpu_custom_call.1} parent=39 // pred_region
          %683 = vsyncadd %s658, 0
          %s684 = smul.addr %s28, 4
          %s685 = smul.addr %s684, 4
          %s686 = scalar_lea.hbm %s6, %s685
          %s687 = sshll.u32 %s661, 4
          %s688 = int_to_ptr.vmem [resolvable:$true] %s687
          %s689 = sshll.u32 %s686, 4
          %s690 = int_to_ptr.hbm [resolvable:$true] %s689
          %695 = dma.vmem_to_hbm [thread:$0]  %s688, 256, %s690, %s658, 64, 64, 4
        $region60: #{tpu_custom_call.1} parent=39 // pred_fallthru
          _
      $region40: #{tpu_custom_call.1} parent=5 // pred_fallthru
        _
      %p696 = scmp.le.s32.totalorder 2, %s23
      // Predicated region
      $region61: #{tpu_custom_call.1} parent=5 // pred_check
        %p697 = pneg %p696
      $region62: #{tpu_custom_call.1} parent=5 // pred_check_branch
        %699 = sbr.rel (%p697) target = $region64
      $region63: #{tpu_custom_call.1} parent=5 // pred_region
        %s700 = ssub.s32 %s23, 2
        // Predicated region
        $region65: #{tpu_custom_call.1} parent=63 // pred_check
          %p701 = pneg %p162
        $region66: #{tpu_custom_call.1} parent=63 // pred_check_branch
          %703 = sbr.rel (%p701) target = $region68
        $region67: #{tpu_custom_call.1} parent=63 // pred_region
          %s704 = sand.u32 %s147, 1
          %s705 = scalar_lea.sflag [#allocation4], %s704
          %s706 = sand.u32 %s147, 1
          %s707 = smul.addr %s706, 16
          %s708 = scalar_lea.vmem [#allocation8], %s707
          %710 = dma.done %s705, 256
        $region68: #{tpu_custom_call.1} parent=63 // pred_fallthru
          _
        // Predicated region
        $region69: #{tpu_custom_call.1} parent=63 // pred_check
          %p711 = pneg %p188
        $region70: #{tpu_custom_call.1} parent=63 // pred_check_branch
          %713 = sbr.rel (%p711) target = $region72
        $region71: #{tpu_custom_call.1} parent=63 // pred_region
          %s714 = sand.u32 %s173, 1
          %s715 = scalar_lea.sflag [#allocation10], %s714
          %s716 = sand.u32 %s173, 1
          %s717 = smul.addr %s716, 16
          %s718 = scalar_lea.vmem [#allocation9], %s717
          %720 = dma.done %s715, 256
        $region72: #{tpu_custom_call.1} parent=63 // pred_fallthru
          _
      $region64: #{tpu_custom_call.1} parent=5 // pred_fallthru
        _
    $region6: #{tpu_custom_call.1} parent=1 // loop_footer
      %s27 = sadd.s32 1, %s23
    $region7: #{tpu_custom_call.1} parent=1 // loop_footer_branch
      %22 = sbr.rel target = $region3
    $region8: #{tpu_custom_call.1} parent=1 // loop_exit
      _
    %721 = vsyncpa [#allocation3], 1
    %s722 = scalar_lea.sflag [#allocation3], 1
    %723 = vsyncpa %s722, 1
    %724 = vsyncpa [#allocation6], 1
    %725 = vsyncpa [#allocation4], 1
    %s726 = scalar_lea.sflag [#allocation4], 1
    %727 = vsyncpa %s726, 1
    %728 = vsyncpa [#allocation10], 1
    %s729 = scalar_lea.sflag [#allocation10], 1
    %730 = vsyncpa %s729, 1

</llo_original>
